<compile_context>
chip_gen: v7x
topology: tpu7x:2x2x1
jax: 0.10.0
libtpu: 0.0.40
codegen_flags: <defaults>
</compile_context>

<pallas_src>
import functools

import jax
import jax.numpy as jnp
import numpy as np
from jax.experimental import pallas as pl
from jax.experimental.pallas import tpu as pltpu


# ----------------------------- hyper-parameters -----------------------------
class HParams:
    nerf_point_encode = 2        # -> input_ch       = 2*2*3 + 3 = 15
    nerf_dir_encode = 1          # -> input_ch_views = 1*2*3 + 3 = 9
    nerf_network_depth = 4       # D
    nerf_channels = 32           # C
    nerf_skips = (2,)            # skip-connection layers


def _round_up(x, m):
    return ((x + m - 1) // m) * m


# ------------------------------- Pallas kernel ------------------------------
def _nerf_kernel(D, skips, C, w_offs, x_ref, w_ref, b_ref, out_ref):
    """Whole NeRF forward for one batch tile.

    x_ref  : (tile, input_ch + input_ch_views)          f32
    w_ref  : packed weight slab (row blocks, see wrapper) in matmul dtype
    b_ref  : packed bias slab, one bias per row           f32
    out_ref: (tile, 4) = [rgb | alpha]                    f32
    """
    Ch = C // 2
    n_skips = len(skips)
    P = C * (1 + n_skips) + Ch          # fused input-projection width
    K_in = x_ref.shape[1]

    mdt = w_ref.dtype

    def wblk(i, rows, cols):
        off = w_offs[i]
        return w_ref[off:off + rows, 0:cols]

    def bias(i, cols):
        return b_ref[i:i + 1, 0:cols]

    def dot_f32(a, W):
        return jnp.dot(a.astype(mdt), W, preferred_element_type=jnp.float32)

    x = x_ref[...]

    # Fused input projection: x @ [W0 | skip point-rows | views rows of Wv].
    proj = dot_f32(x, wblk(0, K_in, P))

    # pts_linears trunk; skip-layer concats replaced by pre-projected terms.
    p = jnp.maximum(proj[:, 0:C] + bias(0, C), 0.0)
    skip_j = 0
    for i in range(1, D):
        h = dot_f32(p, wblk(i, C, C))
        if i in skips:
            s = C * (1 + skip_j)
            h = h + proj[:, s:s + C]
            skip_j += 1
        p = jnp.maximum(h + bias(i, C), 0.0)

    # fused [feature | alpha] head (shared LHS p).
    fa = dot_f32(p, wblk(D, C, C + 1)) + bias(D, C + 1)
    feature = fa[:, 0:C]
    alpha = fa[:, C:C + 1]

    # views branch; views contribution pre-projected -> no lane concat.
    v0 = C * (1 + n_skips)
    h = dot_f32(feature, wblk(D + 1, C, Ch)) + proj[:, v0:v0 + Ch] + bias(D + 1, Ch)
    h = jnp.maximum(h, 0.0)

    rgb = jax.nn.sigmoid(dot_f32(h, wblk(D + 2, Ch, 3)) + bias(D + 2, 3))

    out_ref[:, 0:3] = rgb.astype(out_ref.dtype)
    out_ref[:, 3:4] = alpha.astype(out_ref.dtype)


# --------------------------------- wrapper -----------------------------------
def nerf_forward(points, views, params, *, D, skips, tile_b=2048,
                 matmul_dtype=jnp.bfloat16):
    """points: (B, input_ch) f32, views: (B, input_ch_views) f32."""
    B = points.shape[0]
    input_ch = points.shape[1]
    input_ch_views = views.shape[1]
    C = params["feature"][0].shape[1]
    Ch = C // 2
    skips = tuple(sorted(skips))
    K_in = input_ch + input_ch_views
    P = C * (1 + len(skips)) + Ch

    # --- tile selection: big tiles, no forced splitting; cap for v7x VMEM ---
    tile_b = max(8, (min(int(tile_b), 4096) // 8) * 8)
    steps = max(1, -(-B // tile_b))
    tile = _round_up(-(-B // steps), 8)
    B_pad = steps * tile

    # One lane-dense input slab [points | views], zero-padded in batch.
    x = jnp.concatenate([points, views], axis=1)
    if B_pad != B:
        x = jnp.pad(x, ((0, B_pad - B), (0, 0)))

    # --- fused input-projection weight W_in (K_in, P) ---
    W0, _ = params["pts"][0]
    Wv, _ = params["views"]
    W_in = jnp.zeros((K_in, P), jnp.float32)
    W_in = W_in.at[:input_ch, 0:C].set(W0)
    for j, s in enumerate(skips):
        Ws = params["pts"][s][0]
        W_in = W_in.at[:input_ch, C * (1 + j):C * (2 + j)].set(Ws[:input_ch])
    W_in = W_in.at[input_ch:, C * (1 + len(skips)):].set(Wv[C:])

    # Fused [feature | alpha] head.
    fW, fb = params["feature"]
    aW, ab = params["alpha"]
    headW = jnp.concatenate([fW, aW], axis=1)
    headb = jnp.concatenate([fb, ab], axis=1)

    # Weight blocks, in the order the kernel expects.
    mats = [W_in]
    for i in range(1, D):
        Wi = params["pts"][i][0]
        mats.append(Wi[input_ch:] if i in skips else Wi)   # skip: p-part only
    mats += [headW, Wv[:C], params["rgb"][0]]

    biases = [params["pts"][i][1] for i in range(D)]
    biases += [headb, params["views"][1], params["rgb"][1]]

    # --- pack all weights into one slab, all biases into one slab ---
    row_align = 16                       # safe for both f32 and bf16 packing
    w_width = max(m.shape[1] for m in mats)
    w_offs, r = [], 0
    for m in mats:
        w_offs.append(r)
        r += _round_up(m.shape[0], row_align)
    wslab = jnp.zeros((_round_up(r, row_align), w_width), matmul_dtype)
    for m, off in zip(mats, w_offs):
        wslab = wslab.at[off:off + m.shape[0], :m.shape[1]].set(
            m.astype(matmul_dtype))

    b_width = max(b.shape[-1] for b in biases)
    bslab = jnp.zeros((_round_up(len(biases), 8), b_width), jnp.float32)
    for row, b in enumerate(biases):
        bslab = bslab.at[row, :b.shape[-1]].set(
            b.reshape(-1).astype(jnp.float32))

    kernel = functools.partial(_nerf_kernel, D, skips, C, tuple(w_offs))

    out = pl.pallas_call(
        kernel,
        grid=(steps,),
        in_specs=[
            pl.BlockSpec((tile, K_in), lambda i: (i, 0)),
            pl.BlockSpec(wslab.shape, lambda i: (0, 0)),   # constant -> no re-DMA
            pl.BlockSpec(bslab.shape, lambda i: (0, 0)),
        ],
        out_specs=pl.BlockSpec((tile, 4), lambda i: (i, 0)),
        out_shape=jax.ShapeDtypeStruct((B_pad, 4), jnp.float32),
        compiler_params=pltpu.CompilerParams(
            dimension_semantics=("parallel",),
            vmem_limit_bytes=32 * 1024 * 1024,
        ),
    )(x, wslab, bslab)

    out = out[:B]
    return out[:, :3], out[:, 3:4]


# -------------------------- parameter initialization -------------------------
def init_params(key, hp):
    input_ch = hp.nerf_point_encode * 2 * 3 + 3
    input_ch_views = hp.nerf_dir_encode * 2 * 3 + 3
    C, D, skips = hp.nerf_channels, hp.nerf_network_depth, hp.nerf_skips

    def linear(key, fan_in, fan_out):
        kw, kb = jax.random.split(key)
        bound = 1.0 / np.sqrt(fan_in)
        W = jax.random.uniform(kw, (fan_in, fan_out), jnp.float32, -bound, bound)
        b = jax.random.uniform(kb, (1, fan_out), jnp.float32, -bound, bound)
        return W, b

    keys = jax.random.split(key, D + 4)
    pts = []
    for i in range(D):
        if i == 0:
            fin = input_ch
        elif i in skips:
            fin = C + input_ch
        else:
            fin = C
        pts.append(linear(keys[i], fin, C))

    params = {
        "pts": pts,
        "alpha": linear(keys[D + 0], C, 1),
        "feature": linear(keys[D + 1], C, C),
        "views": linear(keys[D + 2], input_ch_views + C, C // 2),
        "rgb": linear(keys[D + 3], C // 2, 3),
    }
    return params, input_ch, input_ch_views


# ----------------------------- pure-JAX reference ----------------------------
def nerf_reference(points, views, params, *, skips):
    p = points
    for i, (W, b) in enumerate(params["pts"]):
        if i in skips:
            p = jnp.concatenate([points, p], axis=-1)
        p = jnp.maximum(p @ W + b, 0.0)
    alpha = p @ params["alpha"][0] + params["alpha"][1]
    feature = p @ params["feature"][0] + params["feature"][1]
    h = jnp.concatenate([feature, views], axis=-1)
    h = jnp.maximum(h @ params["views"][0] + params["views"][1], 0.0)
    rgb = jax.nn.sigmoid(h @ params["rgb"][0] + params["rgb"][1])
    return rgb, alpha


# ----------------------------------- main ------------------------------------
if __name__ == "__main__":
    hp = HParams()
    key = jax.random.PRNGKey(0)
    kp, kx, kv = jax.random.split(key, 3)

    params, input_ch, input_ch_views = init_params(kp, hp)

    B = 200
    points = jax.random.normal(kx, (B, input_ch), jnp.float32)
    views = jax.random.normal(kv, (B, input_ch_views), jnp.float32)

    rgb_ref, alpha_ref = nerf_reference(points, views, params, skips=hp.nerf_skips)

    # f32 matmul path — tight check vs. reference (single grid step).
    rgb, alpha = nerf_forward(
        points, views, params,
        D=hp.nerf_network_depth, skips=hp.nerf_skips,
        matmul_dtype=jnp.float32,
    )
    rgb, alpha = jax.block_until_ready((rgb, alpha))
    np.testing.assert_allclose(np.asarray(rgb), np.asarray(rgb_ref), atol=1e-4, rtol=1e-4)
    np.testing.assert_allclose(np.asarray(alpha), np.asarray(alpha_ref), atol=1e-4, rtol=1e-4)

    # default bf16 matmul path (f32 accumulation + f32 elementwise).
    rgb_bf, alpha_bf = nerf_forward(
        points, views, params,
        D=hp.nerf_network_depth, skips=hp.nerf_skips,
    )
    rgb_bf, alpha_bf = jax.block_until_ready((rgb_bf, alpha_bf))
    np.testing.assert_allclose(np.asarray(rgb_bf), np.asarray(rgb_ref), atol=5e-2, rtol=5e-2)
    np.testing.assert_allclose(np.asarray(alpha_bf), np.asarray(alpha_ref), atol=5e-2, rtol=5e-2)

    # multi-step grid + batch padding path (small tile) — tight f32 check.
    rgb_t, alpha_t = nerf_forward(
        points, views, params,
        D=hp.nerf_network_depth, skips=hp.nerf_skips,
        tile_b=64, matmul_dtype=jnp.float32,
    )
    rgb_t, alpha_t = jax.block_until_ready((rgb_t, alpha_t))
    np.testing.assert_allclose(np.asarray(rgb_t), np.asarray(rgb_ref), atol=1e-4, rtol=1e-4)
    np.testing.assert_allclose(np.asarray(alpha_t), np.asarray(alpha_ref), atol=1e-4, rtol=1e-4)

    print("KERNEL_OK")
</pallas_src>

<mosaic_0001>
module attributes {stable_mosaic.version = 11 : i64} {
  func.func @_nerf_kernel(%arg0: i32, %arg1: memref<200x24xf32, #tpu.memory_space<vmem>>, %arg2: memref<208x80xf32, #tpu.memory_space<vmem>>, %arg3: memref<8x33xf32, #tpu.memory_space<vmem>>, %arg4: memref<200x4xf32, #tpu.memory_space<vmem>>) attributes {dimension_semantics = [#tpu.dimension_semantics<parallel>], iteration_bounds = array<i64: 1>, scalar_prefetch = 0 : i64, scratch_operands = 0 : i64, tpu.core_type = #tpu.core_type<tc>, window_params = [{transform_indices = @transform_0, window_bounds = array<i64: 200, 24>}, {pipeline_mode = #tpu.pipeline_mode<synchronous>, transform_indices = @transform_1, window_bounds = array<i64: 208, 80>}, {pipeline_mode = #tpu.pipeline_mode<synchronous>, transform_indices = @transform_2, window_bounds = array<i64: 8, 33>}, {transform_indices = @transform_3, window_bounds = array<i64: 200, 4>}]} {
    %c0 = arith.constant 0 : index
    %c0_0 = arith.constant 0 : index
    %0 = vector.load %arg1[%c0, %c0_0] : memref<200x24xf32, #tpu.memory_space<vmem>>, vector<200x24xf32>
    %c0_1 = arith.constant 0 : index
    %c0_2 = arith.constant 0 : index
    %1 = vector.load %arg2[%c0_1, %c0_2] : memref<208x80xf32, #tpu.memory_space<vmem>>, vector<24x80xf32>
    %cst = arith.constant dense<0.000000e+00> : vector<200x80xf32>
    %2 = tpu.matmul %0, %1, %cst {dimension_numbers = #tpu.dot_dimension_numbers<[1], [0], [0], [1], [0, 0, 1, 1], [], []>} : vector<200x24xf32>, vector<24x80xf32>, vector<200x80xf32> -> vector<200x80xf32>
    %3 = vector.extract_strided_slice %2 {offsets = [0, 0], sizes = [200, 32], strides = [1, 1]} : vector<200x80xf32> to vector<200x32xf32>
    %c0_3 = arith.constant 0 : index
    %c0_4 = arith.constant 0 : index
    %4 = vector.load %arg3[%c0_3, %c0_4] : memref<8x33xf32, #tpu.memory_space<vmem>>, vector<1x32xf32>
    %5 = vector.broadcast %4 : vector<1x32xf32> to vector<200x32xf32>
    %6 = arith.addf %3, %5 : vector<200x32xf32>
    %cst_5 = arith.constant 0.000000e+00 : f32
    %7 = vector.broadcast %cst_5 : f32 to vector<200x32xf32>
    %8 = arith.maximumf %6, %7 : vector<200x32xf32>
    %c32 = arith.constant 32 : index
    %c0_6 = arith.constant 0 : index
    %9 = vector.load %arg2[%c32, %c0_6] : memref<208x80xf32, #tpu.memory_space<vmem>>, vector<32x32xf32>
    %cst_7 = arith.constant dense<0.000000e+00> : vector<200x32xf32>
    %10 = tpu.matmul %8, %9, %cst_7 {dimension_numbers = #tpu.dot_dimension_numbers<[1], [0], [0], [1], [0, 0, 1, 1], [], []>} : vector<200x32xf32>, vector<32x32xf32>, vector<200x32xf32> -> vector<200x32xf32>
    %c1 = arith.constant 1 : index
    %c0_8 = arith.constant 0 : index
    %11 = vector.load %arg3[%c1, %c0_8] : memref<8x33xf32, #tpu.memory_space<vmem>>, vector<1x32xf32>
    %12 = vector.broadcast %11 : vector<1x32xf32> to vector<200x32xf32>
    %13 = arith.addf %10, %12 : vector<200x32xf32>
    %cst_9 = arith.constant 0.000000e+00 : f32
    %14 = vector.broadcast %cst_9 : f32 to vector<200x32xf32>
    %15 = arith.maximumf %13, %14 : vector<200x32xf32>
    %c64 = arith.constant 64 : index
    %c0_10 = arith.constant 0 : index
    %16 = vector.load %arg2[%c64, %c0_10] : memref<208x80xf32, #tpu.memory_space<vmem>>, vector<32x32xf32>
    %cst_11 = arith.constant dense<0.000000e+00> : vector<200x32xf32>
    %17 = tpu.matmul %15, %16, %cst_11 {dimension_numbers = #tpu.dot_dimension_numbers<[1], [0], [0], [1], [0, 0, 1, 1], [], []>} : vector<200x32xf32>, vector<32x32xf32>, vector<200x32xf32> -> vector<200x32xf32>
    %18 = vector.extract_strided_slice %2 {offsets = [0, 32], sizes = [200, 32], strides = [1, 1]} : vector<200x80xf32> to vector<200x32xf32>
    %19 = arith.addf %17, %18 : vector<200x32xf32>
    %c2 = arith.constant 2 : index
    %c0_12 = arith.constant 0 : index
    %20 = vector.load %arg3[%c2, %c0_12] : memref<8x33xf32, #tpu.memory_space<vmem>>, vector<1x32xf32>
    %21 = vector.broadcast %20 : vector<1x32xf32> to vector<200x32xf32>
    %22 = arith.addf %19, %21 : vector<200x32xf32>
    %cst_13 = arith.constant 0.000000e+00 : f32
    %23 = vector.broadcast %cst_13 : f32 to vector<200x32xf32>
    %24 = arith.maximumf %22, %23 : vector<200x32xf32>
    %c96 = arith.constant 96 : index
    %c0_14 = arith.constant 0 : index
    %25 = vector.load %arg2[%c96, %c0_14] : memref<208x80xf32, #tpu.memory_space<vmem>>, vector<32x32xf32>
    %cst_15 = arith.constant dense<0.000000e+00> : vector<200x32xf32>
    %26 = tpu.matmul %24, %25, %cst_15 {dimension_numbers = #tpu.dot_dimension_numbers<[1], [0], [0], [1], [0, 0, 1, 1], [], []>} : vector<200x32xf32>, vector<32x32xf32>, vector<200x32xf32> -> vector<200x32xf32>
    %c3 = arith.constant 3 : index
    %c0_16 = arith.constant 0 : index
    %27 = vector.load %arg3[%c3, %c0_16] : memref<8x33xf32, #tpu.memory_space<vmem>>, vector<1x32xf32>
    %28 = vector.broadcast %27 : vector<1x32xf32> to vector<200x32xf32>
    %29 = arith.addf %26, %28 : vector<200x32xf32>
    %cst_17 = arith.constant 0.000000e+00 : f32
    %30 = vector.broadcast %cst_17 : f32 to vector<200x32xf32>
    %31 = arith.maximumf %29, %30 : vector<200x32xf32>
    %c128 = arith.constant 128 : index
    %c0_18 = arith.constant 0 : index
    %32 = vector.load %arg2[%c128, %c0_18] : memref<208x80xf32, #tpu.memory_space<vmem>>, vector<32x33xf32>
    %cst_19 = arith.constant dense<0.000000e+00> : vector<200x33xf32>
    %33 = tpu.matmul %31, %32, %cst_19 {dimension_numbers = #tpu.dot_dimension_numbers<[1], [0], [0], [1], [0, 0, 1, 1], [], []>} : vector<200x32xf32>, vector<32x33xf32>, vector<200x33xf32> -> vector<200x33xf32>
    %c4 = arith.constant 4 : index
    %c0_20 = arith.constant 0 : index
    %34 = vector.load %arg3[%c4, %c0_20] : memref<8x33xf32, #tpu.memory_space<vmem>>, vector<1x33xf32>
    %35 = vector.broadcast %34 : vector<1x33xf32> to vector<200x33xf32>
    %36 = arith.addf %33, %35 : vector<200x33xf32>
    %37 = vector.extract_strided_slice %36 {offsets = [0, 0], sizes = [200, 32], strides = [1, 1]} : vector<200x33xf32> to vector<200x32xf32>
    %38 = vector.extract_strided_slice %36 {offsets = [0, 32], sizes = [200, 1], strides = [1, 1]} : vector<200x33xf32> to vector<200x1xf32>
    %c160 = arith.constant 160 : index
    %c0_21 = arith.constant 0 : index
    %39 = vector.load %arg2[%c160, %c0_21] : memref<208x80xf32, #tpu.memory_space<vmem>>, vector<32x16xf32>
    %cst_22 = arith.constant dense<0.000000e+00> : vector<200x16xf32>
    %40 = tpu.matmul %37, %39, %cst_22 {dimension_numbers = #tpu.dot_dimension_numbers<[1], [0], [0], [1], [0, 0, 1, 1], [], []>} : vector<200x32xf32>, vector<32x16xf32>, vector<200x16xf32> -> vector<200x16xf32>
    %41 = vector.extract_strided_slice %2 {offsets = [0, 64], sizes = [200, 16], strides = [1, 1]} : vector<200x80xf32> to vector<200x16xf32>
    %42 = arith.addf %40, %41 : vector<200x16xf32>
    %c5 = arith.constant 5 : index
    %c0_23 = arith.constant 0 : index
    %43 = vector.load %arg3[%c5, %c0_23] : memref<8x33xf32, #tpu.memory_space<vmem>>, vector<1x16xf32>
    %44 = vector.broadcast %43 : vector<1x16xf32> to vector<200x16xf32>
    %45 = arith.addf %42, %44 : vector<200x16xf32>
    %cst_24 = arith.constant 0.000000e+00 : f32
    %46 = vector.broadcast %cst_24 : f32 to vector<200x16xf32>
    %47 = arith.maximumf %45, %46 : vector<200x16xf32>
    %c192 = arith.constant 192 : index
    %c0_25 = arith.constant 0 : index
    %48 = vector.load %arg2[%c192, %c0_25] : memref<208x80xf32, #tpu.memory_space<vmem>>, vector<16x3xf32>
    %cst_26 = arith.constant dense<0.000000e+00> : vector<200x3xf32>
    %49 = tpu.matmul %47, %48, %cst_26 {dimension_numbers = #tpu.dot_dimension_numbers<[1], [0], [0], [1], [0, 0, 1, 1], [], []>} : vector<200x16xf32>, vector<16x3xf32>, vector<200x3xf32> -> vector<200x3xf32>
    %c6 = arith.constant 6 : index
    %c0_27 = arith.constant 0 : index
    %50 = vector.load %arg3[%c6, %c0_27] : memref<8x33xf32, #tpu.memory_space<vmem>>, vector<1x3xf32>
    %51 = vector.broadcast %50 : vector<1x3xf32> to vector<200x3xf32>
    %52 = arith.addf %49, %51 : vector<200x3xf32>
    %53 = arith.negf %52 : vector<200x3xf32>
    %54 = math.exp %53 : vector<200x3xf32>
    %cst_28 = arith.constant 1.000000e+00 : f32
    %55 = vector.broadcast %cst_28 : f32 to vector<200x3xf32>
    %56 = arith.addf %55, %54 : vector<200x3xf32>
    %57 = arith.divf %55, %56 : vector<200x3xf32>
    %c0_29 = arith.constant 0 : index
    %c0_30 = arith.constant 0 : index
    %58 = vector.load %arg4[%c0_29, %c0_30] : memref<200x4xf32, #tpu.memory_space<vmem>>, vector<200x3xf32>
    tpu.vector_store %arg4[%c0_29, %c0_30], %57 {strides = array<i32>} : memref<200x4xf32, #tpu.memory_space<vmem>>, vector<200x3xf32>,
    %c0_31 = arith.constant 0 : index
    %c3_32 = arith.constant 3 : index
    %59 = vector.load %arg4[%c0_31, %c3_32] : memref<200x4xf32, #tpu.memory_space<vmem>>, vector<200x1xf32>
    tpu.vector_store %arg4[%c0_31, %c3_32], %38 {strides = array<i32>} : memref<200x4xf32, #tpu.memory_space<vmem>>, vector<200x1xf32>,
    return
  }
  func.func @transform_0(%arg0: i32) -> (i32, i32) {
    %c0_i32 = arith.constant 0 : i32
    %c0_i32_0 = arith.constant 0 : i32
    return %arg0, %c0_i32 : i32, i32
  }
  func.func @transform_1(%arg0: i32) -> (i32, i32) {
    %c0_i32 = arith.constant 0 : i32
    %c0_i32_0 = arith.constant 0 : i32
    %c0_i32_1 = arith.constant 0 : i32
    return %c0_i32, %c0_i32_0 : i32, i32
  }
  func.func @transform_2(%arg0: i32) -> (i32, i32) {
    %c0_i32 = arith.constant 0 : i32
    %c0_i32_0 = arith.constant 0 : i32
    %c0_i32_1 = arith.constant 0 : i32
    return %c0_i32, %c0_i32_0 : i32, i32
  }
  func.func @transform_3(%arg0: i32) -> (i32, i32) {
    %c0_i32 = arith.constant 0 : i32
    %c0_i32_0 = arith.constant 0 : i32
    return %arg0, %c0_i32 : i32, i32
  }
}

</mosaic_0001>

<llo_original>
// kernel: tpu_custom_call.1
$region0: #{tpu_custom_call.1}
  #allocation0 [shape = 'u32[]', space=smem, size = 0x4, offset = 0x4, fixed_abs, tag = 'smem constant byte address 0x4 - core index']
  #allocation1 [shape = 'u32[144,128]{1,0:T(1,128)}', space=vmem, size = 0x12000, scoped, tag = 'internal scratch']
  %s0 = inlined_call_operand.vmem [shape: f32[200,24], index: 0, kind: input, shape index: {}]
  %s1 = inlined_call_operand.vmem [shape: f32[208,80], index: 1, kind: input, shape index: {}]
  %s2 = inlined_call_operand.vmem [shape: f32[8,33], index: 2, kind: input, shape index: {}]
  %s3 = inlined_call_operand.vmem [shape: f32[200,4], index: 3, kind: output, shape index: {}]
  %s4 = sld [smem:[#allocation0]]
  $region22: #{tpu_custom_call.1} parent=0
    _
  %s6 = ssub.s32 1, %s4
  %s7 = scalar_select 0, %s6, %s4
  // Predicated region
  $region2: #{tpu_custom_call.1} parent=0 // pred_check
    _
  $region3: #{tpu_custom_call.1} parent=0 // pred_check_branch
    %9 = sbr.rel (0) target = $region5
  $region4: #{tpu_custom_call.1} parent=0 // pred_region
    _
  $region5: #{tpu_custom_call.1} parent=0 // pred_fallthru
    _
  // Predicated region
  $region6: #{tpu_custom_call.1} parent=0 // pred_check
    _
  $region7: #{tpu_custom_call.1} parent=0 // pred_check_branch
    %11 = sbr.rel (0) target = $region9
  $region8: #{tpu_custom_call.1} parent=0 // pred_region
    _
  $region9: #{tpu_custom_call.1} parent=0 // pred_fallthru
    _
  // Predicated region
  $region10: #{tpu_custom_call.1} parent=0 // pred_check
    _
  $region11: #{tpu_custom_call.1} parent=0 // pred_check_branch
    %13 = sbr.rel (0) target = $region13
  $region12: #{tpu_custom_call.1} parent=0 // pred_region
    _
  $region13: #{tpu_custom_call.1} parent=0 // pred_fallthru
    _
  %v14 = vld [vmem:[%s0] sm:$0xff]
  %v15 = vld [vmem:[%s0 + $0x8] sm:$0xff]
  %v16 = vld [vmem:[%s0 + $0x10] sm:$0xff]
  %v17 = vld [vmem:[%s0 + $0x18] sm:$0xff]
  %v18 = vld [vmem:[%s0 + $0x20] sm:$0xff]
  %v19 = vld [vmem:[%s0 + $0x28] sm:$0xff]
  %v20 = vld [vmem:[%s0 + $0x30] sm:$0xff]
  %v21 = vld [vmem:[%s0 + $0x38] sm:$0xff]
  %v22 = vld [vmem:[%s0 + $0x40] sm:$0xff]
  %v23 = vld [vmem:[%s0 + $0x48] sm:$0xff]
  %v24 = vld [vmem:[%s0 + $0x50] sm:$0xff]
  %v25 = vld [vmem:[%s0 + $0x58] sm:$0xff]
  %v26 = vld [vmem:[%s0 + $0x60] sm:$0xff]
  %v27 = vld [vmem:[%s0 + $0x68] sm:$0xff]
  %v28 = vld [vmem:[%s0 + $0x70] sm:$0xff]
  %v29 = vld [vmem:[%s0 + $0x78] sm:$0xff]
  %v30 = vld [vmem:[%s0 + $0x80] sm:$0xff]
  %v31 = vld [vmem:[%s0 + $0x88] sm:$0xff]
  %v32 = vld [vmem:[%s0 + $0x90] sm:$0xff]
  %v33 = vld [vmem:[%s0 + $0x98] sm:$0xff]
  %v34 = vld [vmem:[%s0 + $0xa0] sm:$0xff]
  %v35 = vld [vmem:[%s0 + $0xa8] sm:$0xff]
  %v36 = vld [vmem:[%s0 + $0xb0] sm:$0xff]
  %v37 = vld [vmem:[%s0 + $0xb8] sm:$0xff]
  %v38 = vld [vmem:[%s0 + $0xc0] sm:$0xff]
  %v39 = vld [vmem:[%s1] sm:$0xff]
  %v40 = vld [vmem:[%s1 + $0x8] sm:$0xff]
  %v41 = vld [vmem:[%s1 + $0x10] sm:$0xff]
  %vm42 = vcmask 195584
  %v44 = vsel %vm42, %v14, 0
  %v47 = vsel %vm42, %v15, 0
  %v50 = vsel %vm42, %v16, 0
  %v53 = vsel %vm42, %v17, 0
  %v56 = vsel %vm42, %v18, 0
  %v59 = vsel %vm42, %v19, 0
  %v62 = vsel %vm42, %v20, 0
  %v65 = vsel %vm42, %v21, 0
  %v68 = vsel %vm42, %v22, 0
  %v71 = vsel %vm42, %v23, 0
  %v74 = vsel %vm42, %v24, 0
  %v77 = vsel %vm42, %v25, 0
  %v80 = vsel %vm42, %v26, 0
  %v83 = vsel %vm42, %v27, 0
  %v86 = vsel %vm42, %v28, 0
  %v89 = vsel %vm42, %v29, 0
  %v92 = vsel %vm42, %v30, 0
  %v95 = vsel %vm42, %v31, 0
  %v98 = vsel %vm42, %v32, 0
  %v101 = vsel %vm42, %v33, 0
  %v104 = vsel %vm42, %v34, 0
  %v107 = vsel %vm42, %v35, 0
  %v110 = vsel %vm42, %v36, 0
  %v113 = vsel %vm42, %v37, 0
  %v116 = vsel %vm42, %v38, 0
  %118 = vmatprep.subr.mxu0 0.0
  %119 = vmatpush1.msra.mxu0 %v39
  %120 = vmatprep.subr.mxu0 0.0
  %121 = vmatpush1.msra.mxu0 %v40
  %122 = vmatprep.subr.mxu0 0.0
  %123 = vmatpush1.msra.mxu0 %v41
  %124 = vmatprep.subr.mxu0 0.0
  %125 = vmatpush1.msra.mxu0 0.0
  %126 = vmatprep.subr.mxu0 0.0
  %127 = vmatpush1.msra.mxu0 0.0
  %128 = vmatprep.subr.mxu0 0.0
  %129 = vmatpush1.msra.mxu0 0.0
  %130 = vmatprep.subr.mxu0 0.0
  %131 = vmatpush1.msra.mxu0 0.0
  %132 = vmatprep.subr.mxu0 0.0
  %133 = vmatpush1.msra.mxu0 0.0
  %134 = vmatprep.subr.mxu0 0.0
  %135 = vmatpush1.msra.mxu0 0.0
  %136 = vmatprep.subr.mxu0 0.0
  %137 = vmatpush1.msra.mxu0 0.0
  %138 = vmatprep.subr.mxu0 0.0
  %139 = vmatpush1.msra.mxu0 0.0
  %140 = vmatprep.subr.mxu0 0.0
  %141 = vmatpush1.msra.mxu0 0.0
  %142 = vmatprep.subr.mxu0 0.0
  %143 = vmatpush1.msra.mxu0 0.0
  %144 = vmatprep.subr.mxu0 0.0
  %145 = vmatpush1.msra.mxu0 0.0
  %146 = vmatprep.subr.mxu0 0.0
  %147 = vmatpush1.msra.mxu0 0.0
  %148 = vmatprep.subr.mxu0 0.0
  %149 = vmatpush1.msra.mxu0 0.0
  %150 = vmatprep.subr.mxu0 0.0
  %151 = vmatpush1.msra.mxu0 0.0
  %152 = vmatprep.subr.mxu0 0.0
  %153 = vmatpush1.msra.mxu0 0.0
  %154 = vmatprep.subr.mxu0 0.0
  %155 = vmatpush1.msra.mxu0 0.0
  %156 = vmatprep.subr.mxu0 0.0
  %157 = vmatpush1.msra.mxu0 0.0
  %158 = vmatprep.subr.mxu0 0.0
  %159 = vmatpush1.msra.mxu0 0.0
  %160 = vmatprep.subr.mxu0 0.0
  %161 = vmatpush1.msra.mxu0 0.0
  %162 = vmatprep.subr.mxu0 0.0
  %163 = vmatpush1.msra.mxu0 0.0
  %164 = vmatprep.subr.mxu0 0.0
  %165 = vmatpush1.msra.mxu0 0.0
  %166 = vmatprep.subr.mxu0 0.0
  %167 = vmatpush1.msra.mxu0 0.0
  %168 = vmatprep.subr.mxu0 0.0
  %169 = vmatpush1.msra.mxu0 0.0
  %170 = vmatprep.subr.mxu0 0.0
  %171 = vmatpush1.msra.mxu0 0.0
  %172 = vmatprep.subr.mxu0 0.0
  %173 = vmatpush1.msra.mxu0 0.0
  %174 = vmatprep.subr.mxu0 0.0
  %175 = vmatpush1.msra.mxu0 0.0
  %176 = vmatprep.subr.mxu0 0.0
  %177 = vmatpush1.msra.mxu0 0.0
  %178 = vmatprep.subr.mxu0 0.0
  %179 = vmatpush1.msra.mxu0 0.0
  %180 = vmatprep.subr.mxu0 0.0
  %181 = vmatpush1.msra.mxu0 0.0
  %182 = vmatprep.mubr.f32.mxu0 0.0
  %183 = vmatmul.mubr.f32.gmra.mrb[0].mxu0 %v44
  %v184 = vpop.f32.mrb[0].mxu0
  %v185 = vadd.f32 0.0, %v184
  %v186 = vpop.f32.mrb[0].mxu0
  %187 = vmatprep.mubr.f32.mxu0 0.0
  %188 = vmatmul.mubr.f32.gmra.mrb[0].mxu0 %v47
  %v189 = vpop.f32.mrb[0].mxu0
  %v190 = vadd.f32 0.0, %v189
  %v191 = vpop.f32.mrb[0].mxu0
  %192 = vmatprep.mubr.f32.mxu0 0.0
  %193 = vmatmul.mubr.f32.gmra.mrb[0].mxu0 %v50
  %v194 = vpop.f32.mrb[0].mxu0
  %v195 = vadd.f32 0.0, %v194
  %v196 = vpop.f32.mrb[0].mxu0
  %197 = vmatprep.mubr.f32.mxu0 0.0
  %198 = vmatmul.mubr.f32.gmra.mrb[0].mxu0 %v53
  %v199 = vpop.f32.mrb[0].mxu0
  %v200 = vadd.f32 0.0, %v199
  %v201 = vpop.f32.mrb[0].mxu0
  %202 = vmatprep.mubr.f32.mxu0 0.0
  %203 = vmatmul.mubr.f32.gmra.mrb[0].mxu0 %v56
  %v204 = vpop.f32.mrb[0].mxu0
  %v205 = vadd.f32 0.0, %v204
  %v206 = vpop.f32.mrb[0].mxu0
  %207 = vmatprep.mubr.f32.mxu0 0.0
  %208 = vmatmul.mubr.f32.gmra.mrb[0].mxu0 %v59
  %v209 = vpop.f32.mrb[0].mxu0
  %v210 = vadd.f32 0.0, %v209
  %v211 = vpop.f32.mrb[0].mxu0
  %212 = vmatprep.mubr.f32.mxu0 0.0
  %213 = vmatmul.mubr.f32.gmra.mrb[0].mxu0 %v62
  %v214 = vpop.f32.mrb[0].mxu0
  %v215 = vadd.f32 0.0, %v214
  %v216 = vpop.f32.mrb[0].mxu0
  %217 = vmatprep.mubr.f32.mxu0 0.0
  %218 = vmatmul.mubr.f32.gmra.mrb[0].mxu0 %v65
  %v219 = vpop.f32.mrb[0].mxu0
  %v220 = vadd.f32 0.0, %v219
  %v221 = vpop.f32.mrb[0].mxu0
  %222 = vmatprep.mubr.f32.mxu0 0.0
  %223 = vmatmul.mubr.f32.gmra.mrb[0].mxu0 %v68
  %v224 = vpop.f32.mrb[0].mxu0
  %v225 = vadd.f32 0.0, %v224
  %v226 = vpop.f32.mrb[0].mxu0
  %227 = vmatprep.mubr.f32.mxu0 0.0
  %228 = vmatmul.mubr.f32.gmra.mrb[0].mxu0 %v71
  %v229 = vpop.f32.mrb[0].mxu0
  %v230 = vadd.f32 0.0, %v229
  %v231 = vpop.f32.mrb[0].mxu0
  %232 = vmatprep.mubr.f32.mxu0 0.0
  %233 = vmatmul.mubr.f32.gmra.mrb[0].mxu0 %v74
  %v234 = vpop.f32.mrb[0].mxu0
  %v235 = vadd.f32 0.0, %v234
  %v236 = vpop.f32.mrb[0].mxu0
  %237 = vmatprep.mubr.f32.mxu0 0.0
  %238 = vmatmul.mubr.f32.gmra.mrb[0].mxu0 %v77
  %v239 = vpop.f32.mrb[0].mxu0
  %v240 = vadd.f32 0.0, %v239
  %v241 = vpop.f32.mrb[0].mxu0
  %242 = vmatprep.mubr.f32.mxu0 0.0
  %243 = vmatmul.mubr.f32.gmra.mrb[0].mxu0 %v80
  %v244 = vpop.f32.mrb[0].mxu0
  %v245 = vadd.f32 0.0, %v244
  %v246 = vpop.f32.mrb[0].mxu0
  %247 = vmatprep.mubr.f32.mxu0 0.0
  %248 = vmatmul.mubr.f32.gmra.mrb[0].mxu0 %v83
  %v249 = vpop.f32.mrb[0].mxu0
  %v250 = vadd.f32 0.0, %v249
  %v251 = vpop.f32.mrb[0].mxu0
  %252 = vmatprep.mubr.f32.mxu0 0.0
  %253 = vmatmul.mubr.f32.gmra.mrb[0].mxu0 %v86
  %v254 = vpop.f32.mrb[0].mxu0
  %v255 = vadd.f32 0.0, %v254
  %v256 = vpop.f32.mrb[0].mxu0
  %257 = vmatprep.mubr.f32.mxu0 0.0
  %258 = vmatmul.mubr.f32.gmra.mrb[0].mxu0 %v89
  %v259 = vpop.f32.mrb[0].mxu0
  %v260 = vadd.f32 0.0, %v259
  %v261 = vpop.f32.mrb[0].mxu0
  %262 = vmatprep.mubr.f32.mxu0 0.0
  %263 = vmatmul.mubr.f32.gmra.mrb[0].mxu0 %v92
  %v264 = vpop.f32.mrb[0].mxu0
  %v265 = vadd.f32 0.0, %v264
  %v266 = vpop.f32.mrb[0].mxu0
  %267 = vmatprep.mubr.f32.mxu0 0.0
  %268 = vmatmul.mubr.f32.gmra.mrb[0].mxu0 %v95
  %v269 = vpop.f32.mrb[0].mxu0
  %v270 = vadd.f32 0.0, %v269
  %v271 = vpop.f32.mrb[0].mxu0
  %272 = vmatprep.mubr.f32.mxu0 0.0
  %273 = vmatmul.mubr.f32.gmra.mrb[0].mxu0 %v98
  %v274 = vpop.f32.mrb[0].mxu0
  %v275 = vadd.f32 0.0, %v274
  %v276 = vpop.f32.mrb[0].mxu0
  %277 = vmatprep.mubr.f32.mxu0 0.0
  %278 = vmatmul.mubr.f32.gmra.mrb[0].mxu0 %v101
  %v279 = vpop.f32.mrb[0].mxu0
  %v280 = vadd.f32 0.0, %v279
  %v281 = vpop.f32.mrb[0].mxu0
  %282 = vmatprep.mubr.f32.mxu0 0.0
  %283 = vmatmul.mubr.f32.gmra.mrb[0].mxu0 %v104
  %v284 = vpop.f32.mrb[0].mxu0
  %v285 = vadd.f32 0.0, %v284
  %v286 = vpop.f32.mrb[0].mxu0
  %287 = vmatprep.mubr.f32.mxu0 0.0
  %288 = vmatmul.mubr.f32.gmra.mrb[0].mxu0 %v107
  %v289 = vpop.f32.mrb[0].mxu0
  %v290 = vadd.f32 0.0, %v289
  %v291 = vpop.f32.mrb[0].mxu0
  %292 = vmatprep.mubr.f32.mxu0 0.0
  %293 = vmatmul.mubr.f32.gmra.mrb[0].mxu0 %v110
  %v294 = vpop.f32.mrb[0].mxu0
  %v295 = vadd.f32 0.0, %v294
  %v296 = vpop.f32.mrb[0].mxu0
  %297 = vmatprep.mubr.f32.mxu0 0.0
  %298 = vmatmul.mubr.f32.gmra.mrb[0].mxu0 %v113
  %v299 = vpop.f32.mrb[0].mxu0
  %v300 = vadd.f32 0.0, %v299
  %v301 = vpop.f32.mrb[0].mxu0
  %302 = vmatprep.mubr.f32.mxu0 0.0
  %303 = vmatmul.mubr.f32.gmra.mrb[0].mxu0 %v116
  %v304 = vpop.f32.mrb[0].mxu0
  %v305 = vadd.f32 0.0, %v304
  %v306 = vpop.f32.mrb[0].mxu0
  %307 = vdwg.mxu0
  %v308 = vld [vmem:[%s2] sm:$0x1]
  %v309 = vlaneseq
  %v310 = vshrl.u32 %v309, 7
  %v311 = vsub.s32 0, %v310
  %v312 = vrot.slane %v308, %v311
  %v313 = vadd.f32 %v185, %v312
  %v314 = vadd.f32 %v190, %v312
  %v315 = vadd.f32 %v195, %v312
  %v316 = vadd.f32 %v200, %v312
  %v317 = vadd.f32 %v205, %v312
  %v318 = vadd.f32 %v210, %v312
  %v319 = vadd.f32 %v215, %v312
  %v320 = vadd.f32 %v220, %v312
  %v321 = vadd.f32 %v225, %v312
  %v322 = vadd.f32 %v230, %v312
  %v323 = vadd.f32 %v235, %v312
  %v324 = vadd.f32 %v240, %v312
  %v325 = vadd.f32 %v245, %v312
  %v326 = vadd.f32 %v250, %v312
  %v327 = vadd.f32 %v255, %v312
  %v328 = vadd.f32 %v260, %v312
  %v329 = vadd.f32 %v265, %v312
  %v330 = vadd.f32 %v270, %v312
  %v331 = vadd.f32 %v275, %v312
  %v332 = vadd.f32 %v280, %v312
  %v333 = vadd.f32 %v285, %v312
  %v334 = vadd.f32 %v290, %v312
  %v335 = vadd.f32 %v295, %v312
  %v336 = vadd.f32 %v300, %v312
  %v337 = vadd.f32 %v305, %v312
  %v338 = vmax.f32 %v313, 0.0
  %v339 = vmax.f32 %v314, 0.0
  %v340 = vmax.f32 %v315, 0.0
  %v341 = vmax.f32 %v316, 0.0
  %v342 = vmax.f32 %v317, 0.0
  %v343 = vmax.f32 %v318, 0.0
  %v344 = vmax.f32 %v319, 0.0
  %v345 = vmax.f32 %v320, 0.0
  %v346 = vmax.f32 %v321, 0.0
  %v347 = vmax.f32 %v322, 0.0
  %v348 = vmax.f32 %v323, 0.0
  %v349 = vmax.f32 %v324, 0.0
  %v350 = vmax.f32 %v325, 0.0
  %v351 = vmax.f32 %v326, 0.0
  %v352 = vmax.f32 %v327, 0.0
  %v353 = vmax.f32 %v328, 0.0
  %v354 = vmax.f32 %v329, 0.0
  %v355 = vmax.f32 %v330, 0.0
  %v356 = vmax.f32 %v331, 0.0
  %v357 = vmax.f32 %v332, 0.0
  %v358 = vmax.f32 %v333, 0.0
  %v359 = vmax.f32 %v334, 0.0
  %v360 = vmax.f32 %v335, 0.0
  %v361 = vmax.f32 %v336, 0.0
  %v362 = vmax.f32 %v337, 0.0
  %v363 = vld [vmem:[%s1 + $0x20] sm:$0xff]
  %v364 = vld [vmem:[%s1 + $0x28] sm:$0xff]
  %v365 = vld [vmem:[%s1 + $0x30] sm:$0xff]
  %v366 = vld [vmem:[%s1 + $0x38] sm:$0xff]
  %v367 = vld [vmem:[%s2 + $0x1] sm:$0x1]
  %v368 = vlaneseq
  %v369 = vshrl.u32 %v368, 7
  %v370 = vsub.s32 0, %v369
  %v371 = vrot.slane %v367, %v370
  %vm372 = vcmask 261120
  %v374 = vsel %vm372, %v338, 0
  %v377 = vsel %vm372, %v339, 0
  %v380 = vsel %vm372, %v340, 0
  %v383 = vsel %vm372, %v341, 0
  %v386 = vsel %vm372, %v342, 0
  %v389 = vsel %vm372, %v343, 0
  %v392 = vsel %vm372, %v344, 0
  %v395 = vsel %vm372, %v345, 0
  %v398 = vsel %vm372, %v346, 0
  %v401 = vsel %vm372, %v347, 0
  %v404 = vsel %vm372, %v348, 0
  %v407 = vsel %vm372, %v349, 0
  %v410 = vsel %vm372, %v350, 0
  %v413 = vsel %vm372, %v351, 0
  %v416 = vsel %vm372, %v352, 0
  %v419 = vsel %vm372, %v353, 0
  %v422 = vsel %vm372, %v354, 0
  %v425 = vsel %vm372, %v355, 0
  %v428 = vsel %vm372, %v356, 0
  %v431 = vsel %vm372, %v357, 0
  %v434 = vsel %vm372, %v358, 0
  %v437 = vsel %vm372, %v359, 0
  %v440 = vsel %vm372, %v360, 0
  %v443 = vsel %vm372, %v361, 0
  %v446 = vsel %vm372, %v362, 0
  %448 = vmatprep.subr.mxu0 0.0
  %449 = vmatpush1.msra.mxu0 %v363
  %450 = vmatprep.subr.mxu0 0.0
  %451 = vmatpush1.msra.mxu0 %v364
  %452 = vmatprep.subr.mxu0 0.0
  %453 = vmatpush1.msra.mxu0 %v365
  %454 = vmatprep.subr.mxu0 0.0
  %455 = vmatpush1.msra.mxu0 %v366
  %456 = vmatprep.subr.mxu0 0.0
  %457 = vmatpush1.msra.mxu0 0.0
  %458 = vmatprep.subr.mxu0 0.0
  %459 = vmatpush1.msra.mxu0 0.0
  %460 = vmatprep.subr.mxu0 0.0
  %461 = vmatpush1.msra.mxu0 0.0
  %462 = vmatprep.subr.mxu0 0.0
  %463 = vmatpush1.msra.mxu0 0.0
  %464 = vmatprep.subr.mxu0 0.0
  %465 = vmatpush1.msra.mxu0 0.0
  %466 = vmatprep.subr.mxu0 0.0
  %467 = vmatpush1.msra.mxu0 0.0
  %468 = vmatprep.subr.mxu0 0.0
  %469 = vmatpush1.msra.mxu0 0.0
  %470 = vmatprep.subr.mxu0 0.0
  %471 = vmatpush1.msra.mxu0 0.0
  %472 = vmatprep.subr.mxu0 0.0
  %473 = vmatpush1.msra.mxu0 0.0
  %474 = vmatprep.subr.mxu0 0.0
  %475 = vmatpush1.msra.mxu0 0.0
  %476 = vmatprep.subr.mxu0 0.0
  %477 = vmatpush1.msra.mxu0 0.0
  %478 = vmatprep.subr.mxu0 0.0
  %479 = vmatpush1.msra.mxu0 0.0
  %480 = vmatprep.subr.mxu0 0.0
  %481 = vmatpush1.msra.mxu0 0.0
  %482 = vmatprep.subr.mxu0 0.0
  %483 = vmatpush1.msra.mxu0 0.0
  %484 = vmatprep.subr.mxu0 0.0
  %485 = vmatpush1.msra.mxu0 0.0
  %486 = vmatprep.subr.mxu0 0.0
  %487 = vmatpush1.msra.mxu0 0.0
  %488 = vmatprep.subr.mxu0 0.0
  %489 = vmatpush1.msra.mxu0 0.0
  %490 = vmatprep.subr.mxu0 0.0
  %491 = vmatpush1.msra.mxu0 0.0
  %492 = vmatprep.subr.mxu0 0.0
  %493 = vmatpush1.msra.mxu0 0.0
  %494 = vmatprep.subr.mxu0 0.0
  %495 = vmatpush1.msra.mxu0 0.0
  %496 = vmatprep.subr.mxu0 0.0
  %497 = vmatpush1.msra.mxu0 0.0
  %498 = vmatprep.subr.mxu0 0.0
  %499 = vmatpush1.msra.mxu0 0.0
  %500 = vmatprep.subr.mxu0 0.0
  %501 = vmatpush1.msra.mxu0 0.0
  %502 = vmatprep.subr.mxu0 0.0
  %503 = vmatpush1.msra.mxu0 0.0
  %504 = vmatprep.subr.mxu0 0.0
  %505 = vmatpush1.msra.mxu0 0.0
  %506 = vmatprep.subr.mxu0 0.0
  %507 = vmatpush1.msra.mxu0 0.0
  %508 = vmatprep.subr.mxu0 0.0
  %509 = vmatpush1.msra.mxu0 0.0
  %510 = vmatprep.subr.mxu0 0.0
  %511 = vmatpush1.msra.mxu0 0.0
  %512 = vmatprep.mubr.f32.mxu0 0.0
  %513 = vmatmul.mubr.f32.gmra.mrb[0].mxu0 %v374
  %v514 = vpop.f32.mrb[0].mxu0
  %v515 = vadd.f32 %v371, %v514
  %v516 = vpop.f32.mrb[0].mxu0
  %517 = vmatprep.mubr.f32.mxu0 0.0
  %518 = vmatmul.mubr.f32.gmra.mrb[0].mxu0 %v377
  %v519 = vpop.f32.mrb[0].mxu0
  %v520 = vadd.f32 %v371, %v519
  %v521 = vpop.f32.mrb[0].mxu0
  %522 = vmatprep.mubr.f32.mxu0 0.0
  %523 = vmatmul.mubr.f32.gmra.mrb[0].mxu0 %v380
  %v524 = vpop.f32.mrb[0].mxu0
  %v525 = vadd.f32 %v371, %v524
  %v526 = vpop.f32.mrb[0].mxu0
  %527 = vmatprep.mubr.f32.mxu0 0.0
  %528 = vmatmul.mubr.f32.gmra.mrb[0].mxu0 %v383
  %v529 = vpop.f32.mrb[0].mxu0
  %v530 = vadd.f32 %v371, %v529
  %v531 = vpop.f32.mrb[0].mxu0
  %532 = vmatprep.mubr.f32.mxu0 0.0
  %533 = vmatmul.mubr.f32.gmra.mrb[0].mxu0 %v386
  %v534 = vpop.f32.mrb[0].mxu0
  %v535 = vadd.f32 %v371, %v534
  %v536 = vpop.f32.mrb[0].mxu0
  %537 = vmatprep.mubr.f32.mxu0 0.0
  %538 = vmatmul.mubr.f32.gmra.mrb[0].mxu0 %v389
  %v539 = vpop.f32.mrb[0].mxu0
  %v540 = vadd.f32 %v371, %v539
  %v541 = vpop.f32.mrb[0].mxu0
  %542 = vmatprep.mubr.f32.mxu0 0.0
  %543 = vmatmul.mubr.f32.gmra.mrb[0].mxu0 %v392
  %v544 = vpop.f32.mrb[0].mxu0
  %v545 = vadd.f32 %v371, %v544
  %v546 = vpop.f32.mrb[0].mxu0
  %547 = vmatprep.mubr.f32.mxu0 0.0
  %548 = vmatmul.mubr.f32.gmra.mrb[0].mxu0 %v395
  %v549 = vpop.f32.mrb[0].mxu0
  %v550 = vadd.f32 %v371, %v549
  %v551 = vpop.f32.mrb[0].mxu0
  %552 = vmatprep.mubr.f32.mxu0 0.0
  %553 = vmatmul.mubr.f32.gmra.mrb[0].mxu0 %v398
  %v554 = vpop.f32.mrb[0].mxu0
  %v555 = vadd.f32 %v371, %v554
  %v556 = vpop.f32.mrb[0].mxu0
  %557 = vmatprep.mubr.f32.mxu0 0.0
  %558 = vmatmul.mubr.f32.gmra.mrb[0].mxu0 %v401
  %v559 = vpop.f32.mrb[0].mxu0
  %v560 = vadd.f32 %v371, %v559
  %v561 = vpop.f32.mrb[0].mxu0
  %562 = vmatprep.mubr.f32.mxu0 0.0
  %563 = vmatmul.mubr.f32.gmra.mrb[0].mxu0 %v404
  %v564 = vpop.f32.mrb[0].mxu0
  %v565 = vadd.f32 %v371, %v564
  %v566 = vpop.f32.mrb[0].mxu0
  %567 = vmatprep.mubr.f32.mxu0 0.0
  %568 = vmatmul.mubr.f32.gmra.mrb[0].mxu0 %v407
  %v569 = vpop.f32.mrb[0].mxu0
  %v570 = vadd.f32 %v371, %v569
  %v571 = vpop.f32.mrb[0].mxu0
  %572 = vmatprep.mubr.f32.mxu0 0.0
  %573 = vmatmul.mubr.f32.gmra.mrb[0].mxu0 %v410
  %v574 = vpop.f32.mrb[0].mxu0
  %v575 = vadd.f32 %v371, %v574
  %v576 = vpop.f32.mrb[0].mxu0
  %577 = vmatprep.mubr.f32.mxu0 0.0
  %578 = vmatmul.mubr.f32.gmra.mrb[0].mxu0 %v413
  %v579 = vpop.f32.mrb[0].mxu0
  %v580 = vadd.f32 %v371, %v579
  %v581 = vpop.f32.mrb[0].mxu0
  %582 = vmatprep.mubr.f32.mxu0 0.0
  %583 = vmatmul.mubr.f32.gmra.mrb[0].mxu0 %v416
  %v584 = vpop.f32.mrb[0].mxu0
  %v585 = vadd.f32 %v371, %v584
  %v586 = vpop.f32.mrb[0].mxu0
  %587 = vmatprep.mubr.f32.mxu0 0.0
  %588 = vmatmul.mubr.f32.gmra.mrb[0].mxu0 %v419
  %v589 = vpop.f32.mrb[0].mxu0
  %v590 = vadd.f32 %v371, %v589
  %v591 = vpop.f32.mrb[0].mxu0
  %592 = vmatprep.mubr.f32.mxu0 0.0
  %593 = vmatmul.mubr.f32.gmra.mrb[0].mxu0 %v422
  %v594 = vpop.f32.mrb[0].mxu0
  %v595 = vadd.f32 %v371, %v594
  %v596 = vpop.f32.mrb[0].mxu0
  %597 = vmatprep.mubr.f32.mxu0 0.0
  %598 = vmatmul.mubr.f32.gmra.mrb[0].mxu0 %v425
  %v599 = vpop.f32.mrb[0].mxu0
  %v600 = vadd.f32 %v371, %v599
  %v601 = vpop.f32.mrb[0].mxu0
  %602 = vmatprep.mubr.f32.mxu0 0.0
  %603 = vmatmul.mubr.f32.gmra.mrb[0].mxu0 %v428
  %v604 = vpop.f32.mrb[0].mxu0
  %v605 = vadd.f32 %v371, %v604
  %v606 = vpop.f32.mrb[0].mxu0
  %607 = vmatprep.mubr.f32.mxu0 0.0
  %608 = vmatmul.mubr.f32.gmra.mrb[0].mxu0 %v431
  %v609 = vpop.f32.mrb[0].mxu0
  %v610 = vadd.f32 %v371, %v609
  %v611 = vpop.f32.mrb[0].mxu0
  %612 = vmatprep.mubr.f32.mxu0 0.0
  %613 = vmatmul.mubr.f32.gmra.mrb[0].mxu0 %v434
  %v614 = vpop.f32.mrb[0].mxu0
  %v615 = vadd.f32 %v371, %v614
  %v616 = vpop.f32.mrb[0].mxu0
  %617 = vmatprep.mubr.f32.mxu0 0.0
  %618 = vmatmul.mubr.f32.gmra.mrb[0].mxu0 %v437
  %v619 = vpop.f32.mrb[0].mxu0
  %v620 = vadd.f32 %v371, %v619
  %v621 = vpop.f32.mrb[0].mxu0
  %622 = vmatprep.mubr.f32.mxu0 0.0
  %623 = vmatmul.mubr.f32.gmra.mrb[0].mxu0 %v440
  %v624 = vpop.f32.mrb[0].mxu0
  %v625 = vadd.f32 %v371, %v624
  %v626 = vpop.f32.mrb[0].mxu0
  %627 = vmatprep.mubr.f32.mxu0 0.0
  %628 = vmatmul.mubr.f32.gmra.mrb[0].mxu0 %v443
  %v629 = vpop.f32.mrb[0].mxu0
  %v630 = vadd.f32 %v371, %v629
  %v631 = vpop.f32.mrb[0].mxu0
  %632 = vmatprep.mubr.f32.mxu0 0.0
  %633 = vmatmul.mubr.f32.gmra.mrb[0].mxu0 %v446
  %v634 = vpop.f32.mrb[0].mxu0
  %v635 = vadd.f32 %v371, %v634
  %v636 = vpop.f32.mrb[0].mxu0
  %637 = vdwg.mxu0
  %v638 = vmax.f32 %v515, 0.0
  %v639 = vmax.f32 %v520, 0.0
  %v640 = vmax.f32 %v525, 0.0
  %v641 = vmax.f32 %v530, 0.0
  %v642 = vmax.f32 %v535, 0.0
  %v643 = vmax.f32 %v540, 0.0
  %v644 = vmax.f32 %v545, 0.0
  %v645 = vmax.f32 %v550, 0.0
  %v646 = vmax.f32 %v555, 0.0
  %v647 = vmax.f32 %v560, 0.0
  %v648 = vmax.f32 %v565, 0.0
  %v649 = vmax.f32 %v570, 0.0
  %v650 = vmax.f32 %v575, 0.0
  %v651 = vmax.f32 %v580, 0.0
  %v652 = vmax.f32 %v585, 0.0
  %v653 = vmax.f32 %v590, 0.0
  %v654 = vmax.f32 %v595, 0.0
  %v655 = vmax.f32 %v600, 0.0
  %v656 = vmax.f32 %v605, 0.0
  %v657 = vmax.f32 %v610, 0.0
  %v658 = vmax.f32 %v615, 0.0
  %v659 = vmax.f32 %v620, 0.0
  %v660 = vmax.f32 %v625, 0.0
  %v661 = vmax.f32 %v630, 0.0
  %v662 = vmax.f32 %v635, 0.0
  %v663 = vld [vmem:[%s1 + $0x40] sm:$0xff]
  %v664 = vld [vmem:[%s1 + $0x48] sm:$0xff]
  %v665 = vld [vmem:[%s1 + $0x50] sm:$0xff]
  %v666 = vld [vmem:[%s1 + $0x58] sm:$0xff]
  %692 = vrot.lane.b32.xlu0 %v185, 96
  %v693 = vpop.permute.xlu0 %692
  %694 = vrot.lane.b32.xlu0 %v190, 96
  %v695 = vpop.permute.xlu0 %694
  %696 = vrot.lane.b32.xlu0 %v195, 96
  %v697 = vpop.permute.xlu0 %696
  %698 = vrot.lane.b32.xlu0 %v200, 96
  %v699 = vpop.permute.xlu0 %698
  %700 = vrot.lane.b32.xlu0 %v205, 96
  %v701 = vpop.permute.xlu0 %700
  %702 = vrot.lane.b32.xlu0 %v210, 96
  %v703 = vpop.permute.xlu0 %702
  %704 = vrot.lane.b32.xlu0 %v215, 96
  %v705 = vpop.permute.xlu0 %704
  %706 = vrot.lane.b32.xlu0 %v220, 96
  %v707 = vpop.permute.xlu0 %706
  %708 = vrot.lane.b32.xlu0 %v225, 96
  %v709 = vpop.permute.xlu0 %708
  %710 = vrot.lane.b32.xlu0 %v230, 96
  %v711 = vpop.permute.xlu0 %710
  %712 = vrot.lane.b32.xlu0 %v235, 96
  %v713 = vpop.permute.xlu0 %712
  %714 = vrot.lane.b32.xlu0 %v240, 96
  %v715 = vpop.permute.xlu0 %714
  %716 = vrot.lane.b32.xlu0 %v245, 96
  %v717 = vpop.permute.xlu0 %716
  %718 = vrot.lane.b32.xlu0 %v250, 96
  %v719 = vpop.permute.xlu0 %718
  %720 = vrot.lane.b32.xlu0 %v255, 96
  %v721 = vpop.permute.xlu0 %720
  %722 = vrot.lane.b32.xlu0 %v260, 96
  %v723 = vpop.permute.xlu0 %722
  %724 = vrot.lane.b32.xlu0 %v265, 96
  %v725 = vpop.permute.xlu0 %724
  %726 = vrot.lane.b32.xlu0 %v270, 96
  %v727 = vpop.permute.xlu0 %726
  %728 = vrot.lane.b32.xlu0 %v275, 96
  %v729 = vpop.permute.xlu0 %728
  %730 = vrot.lane.b32.xlu0 %v280, 96
  %v731 = vpop.permute.xlu0 %730
  %732 = vrot.lane.b32.xlu0 %v285, 96
  %v733 = vpop.permute.xlu0 %732
  %734 = vrot.lane.b32.xlu0 %v290, 96
  %v735 = vpop.permute.xlu0 %734
  %736 = vrot.lane.b32.xlu0 %v295, 96
  %v737 = vpop.permute.xlu0 %736
  %738 = vrot.lane.b32.xlu0 %v300, 96
  %v739 = vpop.permute.xlu0 %738
  %740 = vrot.lane.b32.xlu0 %v305, 96
  %v741 = vpop.permute.xlu0 %740
  %v768 = vsel %vm372, %v638, 0
  %v771 = vsel %vm372, %v639, 0
  %v774 = vsel %vm372, %v640, 0
  %v777 = vsel %vm372, %v641, 0
  %v780 = vsel %vm372, %v642, 0
  %v783 = vsel %vm372, %v643, 0
  %v786 = vsel %vm372, %v644, 0
  %v789 = vsel %vm372, %v645, 0
  %v792 = vsel %vm372, %v646, 0
  %v795 = vsel %vm372, %v647, 0
  %v798 = vsel %vm372, %v648, 0
  %v801 = vsel %vm372, %v649, 0
  %v804 = vsel %vm372, %v650, 0
  %v807 = vsel %vm372, %v651, 0
  %v810 = vsel %vm372, %v652, 0
  %v813 = vsel %vm372, %v653, 0
  %v816 = vsel %vm372, %v654, 0
  %v819 = vsel %vm372, %v655, 0
  %v822 = vsel %vm372, %v656, 0
  %v825 = vsel %vm372, %v657, 0
  %v828 = vsel %vm372, %v658, 0
  %v831 = vsel %vm372, %v659, 0
  %v834 = vsel %vm372, %v660, 0
  %v837 = vsel %vm372, %v661, 0
  %v840 = vsel %vm372, %v662, 0
  %842 = vmatprep.subr.mxu0 0.0
  %843 = vmatpush1.msra.mxu0 %v663
  %844 = vmatprep.subr.mxu0 0.0
  %845 = vmatpush1.msra.mxu0 %v664
  %846 = vmatprep.subr.mxu0 0.0
  %847 = vmatpush1.msra.mxu0 %v665
  %848 = vmatprep.subr.mxu0 0.0
  %849 = vmatpush1.msra.mxu0 %v666
  %850 = vmatprep.subr.mxu0 0.0
  %851 = vmatpush1.msra.mxu0 0.0
  %852 = vmatprep.subr.mxu0 0.0
  %853 = vmatpush1.msra.mxu0 0.0
  %854 = vmatprep.subr.mxu0 0.0
  %855 = vmatpush1.msra.mxu0 0.0
  %856 = vmatprep.subr.mxu0 0.0
  %857 = vmatpush1.msra.mxu0 0.0
  %858 = vmatprep.subr.mxu0 0.0
  %859 = vmatpush1.msra.mxu0 0.0
  %860 = vmatprep.subr.mxu0 0.0
  %861 = vmatpush1.msra.mxu0 0.0
  %862 = vmatprep.subr.mxu0 0.0
  %863 = vmatpush1.msra.mxu0 0.0
  %864 = vmatprep.subr.mxu0 0.0
  %865 = vmatpush1.msra.mxu0 0.0
  %866 = vmatprep.subr.mxu0 0.0
  %867 = vmatpush1.msra.mxu0 0.0
  %868 = vmatprep.subr.mxu0 0.0
  %869 = vmatpush1.msra.mxu0 0.0
  %870 = vmatprep.subr.mxu0 0.0
  %871 = vmatpush1.msra.mxu0 0.0
  %872 = vmatprep.subr.mxu0 0.0
  %873 = vmatpush1.msra.mxu0 0.0
  %874 = vmatprep.subr.mxu0 0.0
  %875 = vmatpush1.msra.mxu0 0.0
  %876 = vmatprep.subr.mxu0 0.0
  %877 = vmatpush1.msra.mxu0 0.0
  %878 = vmatprep.subr.mxu0 0.0
  %879 = vmatpush1.msra.mxu0 0.0
  %880 = vmatprep.subr.mxu0 0.0
  %881 = vmatpush1.msra.mxu0 0.0
  %882 = vmatprep.subr.mxu0 0.0
  %883 = vmatpush1.msra.mxu0 0.0
  %884 = vmatprep.subr.mxu0 0.0
  %885 = vmatpush1.msra.mxu0 0.0
  %886 = vmatprep.subr.mxu0 0.0
  %887 = vmatpush1.msra.mxu0 0.0
  %888 = vmatprep.subr.mxu0 0.0
  %889 = vmatpush1.msra.mxu0 0.0
  %890 = vmatprep.subr.mxu0 0.0
  %891 = vmatpush1.msra.mxu0 0.0
  %892 = vmatprep.subr.mxu0 0.0
  %893 = vmatpush1.msra.mxu0 0.0
  %894 = vmatprep.subr.mxu0 0.0
  %895 = vmatpush1.msra.mxu0 0.0
  %896 = vmatprep.subr.mxu0 0.0
  %897 = vmatpush1.msra.mxu0 0.0
  %898 = vmatprep.subr.mxu0 0.0
  %899 = vmatpush1.msra.mxu0 0.0
  %900 = vmatprep.subr.mxu0 0.0
  %901 = vmatpush1.msra.mxu0 0.0
  %902 = vmatprep.subr.mxu0 0.0
  %903 = vmatpush1.msra.mxu0 0.0
  %904 = vmatprep.subr.mxu0 0.0
  %905 = vmatpush1.msra.mxu0 0.0
  %906 = vmatprep.mubr.f32.mxu0 0.0
  %907 = vmatmul.mubr.f32.gmra.mrb[0].mxu0 %v768
  %v908 = vpop.f32.mrb[0].mxu0
  %v909 = vadd.f32 %v693, %v908
  %v910 = vpop.f32.mrb[0].mxu0
  %911 = vmatprep.mubr.f32.mxu0 0.0
  %912 = vmatmul.mubr.f32.gmra.mrb[0].mxu0 %v771
  %v913 = vpop.f32.mrb[0].mxu0
  %v914 = vadd.f32 %v695, %v913
  %v915 = vpop.f32.mrb[0].mxu0
  %916 = vmatprep.mubr.f32.mxu0 0.0
  %917 = vmatmul.mubr.f32.gmra.mrb[0].mxu0 %v774
  %v918 = vpop.f32.mrb[0].mxu0
  %v919 = vadd.f32 %v697, %v918
  %v920 = vpop.f32.mrb[0].mxu0
  %921 = vmatprep.mubr.f32.mxu0 0.0
  %922 = vmatmul.mubr.f32.gmra.mrb[0].mxu0 %v777
  %v923 = vpop.f32.mrb[0].mxu0
  %v924 = vadd.f32 %v699, %v923
  %v925 = vpop.f32.mrb[0].mxu0
  %926 = vmatprep.mubr.f32.mxu0 0.0
  %927 = vmatmul.mubr.f32.gmra.mrb[0].mxu0 %v780
  %v928 = vpop.f32.mrb[0].mxu0
  %v929 = vadd.f32 %v701, %v928
  %v930 = vpop.f32.mrb[0].mxu0
  %931 = vmatprep.mubr.f32.mxu0 0.0
  %932 = vmatmul.mubr.f32.gmra.mrb[0].mxu0 %v783
  %v933 = vpop.f32.mrb[0].mxu0
  %v934 = vadd.f32 %v703, %v933
  %v935 = vpop.f32.mrb[0].mxu0
  %936 = vmatprep.mubr.f32.mxu0 0.0
  %937 = vmatmul.mubr.f32.gmra.mrb[0].mxu0 %v786
  %v938 = vpop.f32.mrb[0].mxu0
  %v939 = vadd.f32 %v705, %v938
  %v940 = vpop.f32.mrb[0].mxu0
  %941 = vmatprep.mubr.f32.mxu0 0.0
  %942 = vmatmul.mubr.f32.gmra.mrb[0].mxu0 %v789
  %v943 = vpop.f32.mrb[0].mxu0
  %v944 = vadd.f32 %v707, %v943
  %v945 = vpop.f32.mrb[0].mxu0
  %946 = vmatprep.mubr.f32.mxu0 0.0
  %947 = vmatmul.mubr.f32.gmra.mrb[0].mxu0 %v792
  %v948 = vpop.f32.mrb[0].mxu0
  %v949 = vadd.f32 %v709, %v948
  %v950 = vpop.f32.mrb[0].mxu0
  %951 = vmatprep.mubr.f32.mxu0 0.0
  %952 = vmatmul.mubr.f32.gmra.mrb[0].mxu0 %v795
  %v953 = vpop.f32.mrb[0].mxu0
  %v954 = vadd.f32 %v711, %v953
  %v955 = vpop.f32.mrb[0].mxu0
  %956 = vmatprep.mubr.f32.mxu0 0.0
  %957 = vmatmul.mubr.f32.gmra.mrb[0].mxu0 %v798
  %v958 = vpop.f32.mrb[0].mxu0
  %v959 = vadd.f32 %v713, %v958
  %v960 = vpop.f32.mrb[0].mxu0
  %961 = vmatprep.mubr.f32.mxu0 0.0
  %962 = vmatmul.mubr.f32.gmra.mrb[0].mxu0 %v801
  %v963 = vpop.f32.mrb[0].mxu0
  %v964 = vadd.f32 %v715, %v963
  %v965 = vpop.f32.mrb[0].mxu0
  %966 = vmatprep.mubr.f32.mxu0 0.0
  %967 = vmatmul.mubr.f32.gmra.mrb[0].mxu0 %v804
  %v968 = vpop.f32.mrb[0].mxu0
  %v969 = vadd.f32 %v717, %v968
  %v970 = vpop.f32.mrb[0].mxu0
  %971 = vmatprep.mubr.f32.mxu0 0.0
  %972 = vmatmul.mubr.f32.gmra.mrb[0].mxu0 %v807
  %v973 = vpop.f32.mrb[0].mxu0
  %v974 = vadd.f32 %v719, %v973
  %v975 = vpop.f32.mrb[0].mxu0
  %976 = vmatprep.mubr.f32.mxu0 0.0
  %977 = vmatmul.mubr.f32.gmra.mrb[0].mxu0 %v810
  %v978 = vpop.f32.mrb[0].mxu0
  %v979 = vadd.f32 %v721, %v978
  %v980 = vpop.f32.mrb[0].mxu0
  %981 = vmatprep.mubr.f32.mxu0 0.0
  %982 = vmatmul.mubr.f32.gmra.mrb[0].mxu0 %v813
  %v983 = vpop.f32.mrb[0].mxu0
  %v984 = vadd.f32 %v723, %v983
  %v985 = vpop.f32.mrb[0].mxu0
  %986 = vmatprep.mubr.f32.mxu0 0.0
  %987 = vmatmul.mubr.f32.gmra.mrb[0].mxu0 %v816
  %v988 = vpop.f32.mrb[0].mxu0
  %v989 = vadd.f32 %v725, %v988
  %v990 = vpop.f32.mrb[0].mxu0
  %991 = vmatprep.mubr.f32.mxu0 0.0
  %992 = vmatmul.mubr.f32.gmra.mrb[0].mxu0 %v819
  %v993 = vpop.f32.mrb[0].mxu0
  %v994 = vadd.f32 %v727, %v993
  %v995 = vpop.f32.mrb[0].mxu0
  %996 = vmatprep.mubr.f32.mxu0 0.0
  %997 = vmatmul.mubr.f32.gmra.mrb[0].mxu0 %v822
  %v998 = vpop.f32.mrb[0].mxu0
  %v999 = vadd.f32 %v729, %v998
  %v1000 = vpop.f32.mrb[0].mxu0
  %1001 = vmatprep.mubr.f32.mxu0 0.0
  %1002 = vmatmul.mubr.f32.gmra.mrb[0].mxu0 %v825
  %v1003 = vpop.f32.mrb[0].mxu0
  %v1004 = vadd.f32 %v731, %v1003
  %v1005 = vpop.f32.mrb[0].mxu0
  %1006 = vmatprep.mubr.f32.mxu0 0.0
  %1007 = vmatmul.mubr.f32.gmra.mrb[0].mxu0 %v828
  %v1008 = vpop.f32.mrb[0].mxu0
  %v1009 = vadd.f32 %v733, %v1008
  %v1010 = vpop.f32.mrb[0].mxu0
  %1011 = vmatprep.mubr.f32.mxu0 0.0
  %1012 = vmatmul.mubr.f32.gmra.mrb[0].mxu0 %v831
  %v1013 = vpop.f32.mrb[0].mxu0
  %v1014 = vadd.f32 %v735, %v1013
  %v1015 = vpop.f32.mrb[0].mxu0
  %1016 = vmatprep.mubr.f32.mxu0 0.0
  %1017 = vmatmul.mubr.f32.gmra.mrb[0].mxu0 %v834
  %v1018 = vpop.f32.mrb[0].mxu0
  %v1019 = vadd.f32 %v737, %v1018
  %v1020 = vpop.f32.mrb[0].mxu0
  %1021 = vmatprep.mubr.f32.mxu0 0.0
  %1022 = vmatmul.mubr.f32.gmra.mrb[0].mxu0 %v837
  %v1023 = vpop.f32.mrb[0].mxu0
  %v1024 = vadd.f32 %v739, %v1023
  %v1025 = vpop.f32.mrb[0].mxu0
  %1026 = vmatprep.mubr.f32.mxu0 0.0
  %1027 = vmatmul.mubr.f32.gmra.mrb[0].mxu0 %v840
  %v1028 = vpop.f32.mrb[0].mxu0
  %v1029 = vadd.f32 %v741, %v1028
  %v1030 = vpop.f32.mrb[0].mxu0
  %1031 = vdwg.mxu0
  %v1032 = vld [vmem:[%s2 + $0x2] sm:$0x1]
  %v1033 = vlaneseq
  %v1034 = vshrl.u32 %v1033, 7
  %v1035 = vsub.s32 0, %v1034
  %v1036 = vrot.slane %v1032, %v1035
  %v1037 = vadd.f32 %v909, %v1036
  %v1038 = vadd.f32 %v914, %v1036
  %v1039 = vadd.f32 %v919, %v1036
  %v1040 = vadd.f32 %v924, %v1036
  %v1041 = vadd.f32 %v929, %v1036
  %v1042 = vadd.f32 %v934, %v1036
  %v1043 = vadd.f32 %v939, %v1036
  %v1044 = vadd.f32 %v944, %v1036
  %v1045 = vadd.f32 %v949, %v1036
  %v1046 = vadd.f32 %v954, %v1036
  %v1047 = vadd.f32 %v959, %v1036
  %v1048 = vadd.f32 %v964, %v1036
  %v1049 = vadd.f32 %v969, %v1036
  %v1050 = vadd.f32 %v974, %v1036
  %v1051 = vadd.f32 %v979, %v1036
  %v1052 = vadd.f32 %v984, %v1036
  %v1053 = vadd.f32 %v989, %v1036
  %v1054 = vadd.f32 %v994, %v1036
  %v1055 = vadd.f32 %v999, %v1036
  %v1056 = vadd.f32 %v1004, %v1036
  %v1057 = vadd.f32 %v1009, %v1036
  %v1058 = vadd.f32 %v1014, %v1036
  %v1059 = vadd.f32 %v1019, %v1036
  %v1060 = vadd.f32 %v1024, %v1036
  %v1061 = vadd.f32 %v1029, %v1036
  %v1062 = vmax.f32 %v1037, 0.0
  %v1063 = vmax.f32 %v1038, 0.0
  %v1064 = vmax.f32 %v1039, 0.0
  %v1065 = vmax.f32 %v1040, 0.0
  %v1066 = vmax.f32 %v1041, 0.0
  %v1067 = vmax.f32 %v1042, 0.0
  %v1068 = vmax.f32 %v1043, 0.0
  %v1069 = vmax.f32 %v1044, 0.0
  %v1070 = vmax.f32 %v1045, 0.0
  %v1071 = vmax.f32 %v1046, 0.0
  %v1072 = vmax.f32 %v1047, 0.0
  %v1073 = vmax.f32 %v1048, 0.0
  %v1074 = vmax.f32 %v1049, 0.0
  %v1075 = vmax.f32 %v1050, 0.0
  %v1076 = vmax.f32 %v1051, 0.0
  %v1077 = vmax.f32 %v1052, 0.0
  %v1078 = vmax.f32 %v1053, 0.0
  %v1079 = vmax.f32 %v1054, 0.0
  %v1080 = vmax.f32 %v1055, 0.0
  %v1081 = vmax.f32 %v1056, 0.0
  %v1082 = vmax.f32 %v1057, 0.0
  %v1083 = vmax.f32 %v1058, 0.0
  %v1084 = vmax.f32 %v1059, 0.0
  %v1085 = vmax.f32 %v1060, 0.0
  %v1086 = vmax.f32 %v1061, 0.0
  %v1087 = vld [vmem:[%s1 + $0x60] sm:$0xff]
  %v1088 = vld [vmem:[%s1 + $0x68] sm:$0xff]
  %v1089 = vld [vmem:[%s1 + $0x70] sm:$0xff]
  %v1090 = vld [vmem:[%s1 + $0x78] sm:$0xff]
  %v1091 = vld [vmem:[%s2 + $0x3] sm:$0x1]
  %v1092 = vlaneseq
  %v1093 = vshrl.u32 %v1092, 7
  %v1094 = vsub.s32 0, %v1093
  %v1095 = vrot.slane %v1091, %v1094
  %v1097 = vsel %vm372, %v1062, 0
  %v1100 = vsel %vm372, %v1063, 0
  %v1103 = vsel %vm372, %v1064, 0
  %v1106 = vsel %vm372, %v1065, 0
  %v1109 = vsel %vm372, %v1066, 0
  %v1112 = vsel %vm372, %v1067, 0
  %v1115 = vsel %vm372, %v1068, 0
  %v1118 = vsel %vm372, %v1069, 0
  %v1121 = vsel %vm372, %v1070, 0
  %v1124 = vsel %vm372, %v1071, 0
  %v1127 = vsel %vm372, %v1072, 0
  %v1130 = vsel %vm372, %v1073, 0
  %v1133 = vsel %vm372, %v1074, 0
  %v1136 = vsel %vm372, %v1075, 0
  %v1139 = vsel %vm372, %v1076, 0
  %v1142 = vsel %vm372, %v1077, 0
  %v1145 = vsel %vm372, %v1078, 0
  %v1148 = vsel %vm372, %v1079, 0
  %v1151 = vsel %vm372, %v1080, 0
  %v1154 = vsel %vm372, %v1081, 0
  %v1157 = vsel %vm372, %v1082, 0
  %v1160 = vsel %vm372, %v1083, 0
  %v1163 = vsel %vm372, %v1084, 0
  %v1166 = vsel %vm372, %v1085, 0
  %v1169 = vsel %vm372, %v1086, 0
  %1171 = vmatprep.subr.mxu0 0.0
  %1172 = vmatpush1.msra.mxu0 %v1087
  %1173 = vmatprep.subr.mxu0 0.0
  %1174 = vmatpush1.msra.mxu0 %v1088
  %1175 = vmatprep.subr.mxu0 0.0
  %1176 = vmatpush1.msra.mxu0 %v1089
  %1177 = vmatprep.subr.mxu0 0.0
  %1178 = vmatpush1.msra.mxu0 %v1090
  %1179 = vmatprep.subr.mxu0 0.0
  %1180 = vmatpush1.msra.mxu0 0.0
  %1181 = vmatprep.subr.mxu0 0.0
  %1182 = vmatpush1.msra.mxu0 0.0
  %1183 = vmatprep.subr.mxu0 0.0
  %1184 = vmatpush1.msra.mxu0 0.0
  %1185 = vmatprep.subr.mxu0 0.0
  %1186 = vmatpush1.msra.mxu0 0.0
  %1187 = vmatprep.subr.mxu0 0.0
  %1188 = vmatpush1.msra.mxu0 0.0
  %1189 = vmatprep.subr.mxu0 0.0
  %1190 = vmatpush1.msra.mxu0 0.0
  %1191 = vmatprep.subr.mxu0 0.0
  %1192 = vmatpush1.msra.mxu0 0.0
  %1193 = vmatprep.subr.mxu0 0.0
  %1194 = vmatpush1.msra.mxu0 0.0
  %1195 = vmatprep.subr.mxu0 0.0
  %1196 = vmatpush1.msra.mxu0 0.0
  %1197 = vmatprep.subr.mxu0 0.0
  %1198 = vmatpush1.msra.mxu0 0.0
  %1199 = vmatprep.subr.mxu0 0.0
  %1200 = vmatpush1.msra.mxu0 0.0
  %1201 = vmatprep.subr.mxu0 0.0
  %1202 = vmatpush1.msra.mxu0 0.0
  %1203 = vmatprep.subr.mxu0 0.0
  %1204 = vmatpush1.msra.mxu0 0.0
  %1205 = vmatprep.subr.mxu0 0.0
  %1206 = vmatpush1.msra.mxu0 0.0
  %1207 = vmatprep.subr.mxu0 0.0
  %1208 = vmatpush1.msra.mxu0 0.0
  %1209 = vmatprep.subr.mxu0 0.0
  %1210 = vmatpush1.msra.mxu0 0.0
  %1211 = vmatprep.subr.mxu0 0.0
  %1212 = vmatpush1.msra.mxu0 0.0
  %1213 = vmatprep.subr.mxu0 0.0
  %1214 = vmatpush1.msra.mxu0 0.0
  %1215 = vmatprep.subr.mxu0 0.0
  %1216 = vmatpush1.msra.mxu0 0.0
  %1217 = vmatprep.subr.mxu0 0.0
  %1218 = vmatpush1.msra.mxu0 0.0
  %1219 = vmatprep.subr.mxu0 0.0
  %1220 = vmatpush1.msra.mxu0 0.0
  %1221 = vmatprep.subr.mxu0 0.0
  %1222 = vmatpush1.msra.mxu0 0.0
  %1223 = vmatprep.subr.mxu0 0.0
  %1224 = vmatpush1.msra.mxu0 0.0
  %1225 = vmatprep.subr.mxu0 0.0
  %1226 = vmatpush1.msra.mxu0 0.0
  %1227 = vmatprep.subr.mxu0 0.0
  %1228 = vmatpush1.msra.mxu0 0.0
  %1229 = vmatprep.subr.mxu0 0.0
  %1230 = vmatpush1.msra.mxu0 0.0
  %1231 = vmatprep.subr.mxu0 0.0
  %1232 = vmatpush1.msra.mxu0 0.0
  %1233 = vmatprep.subr.mxu0 0.0
  %1234 = vmatpush1.msra.mxu0 0.0
  %1235 = vmatprep.mubr.f32.mxu0 0.0
  %1236 = vmatmul.mubr.f32.gmra.mrb[0].mxu0 %v1097
  %v1237 = vpop.f32.mrb[0].mxu0
  %v1238 = vadd.f32 %v1095, %v1237
  %v1239 = vpop.f32.mrb[0].mxu0
  %1240 = vmatprep.mubr.f32.mxu0 0.0
  %1241 = vmatmul.mubr.f32.gmra.mrb[0].mxu0 %v1100
  %v1242 = vpop.f32.mrb[0].mxu0
  %v1243 = vadd.f32 %v1095, %v1242
  %v1244 = vpop.f32.mrb[0].mxu0
  %1245 = vmatprep.mubr.f32.mxu0 0.0
  %1246 = vmatmul.mubr.f32.gmra.mrb[0].mxu0 %v1103
  %v1247 = vpop.f32.mrb[0].mxu0
  %v1248 = vadd.f32 %v1095, %v1247
  %v1249 = vpop.f32.mrb[0].mxu0
  %1250 = vmatprep.mubr.f32.mxu0 0.0
  %1251 = vmatmul.mubr.f32.gmra.mrb[0].mxu0 %v1106
  %v1252 = vpop.f32.mrb[0].mxu0
  %v1253 = vadd.f32 %v1095, %v1252
  %v1254 = vpop.f32.mrb[0].mxu0
  %1255 = vmatprep.mubr.f32.mxu0 0.0
  %1256 = vmatmul.mubr.f32.gmra.mrb[0].mxu0 %v1109
  %v1257 = vpop.f32.mrb[0].mxu0
  %v1258 = vadd.f32 %v1095, %v1257
  %v1259 = vpop.f32.mrb[0].mxu0
  %1260 = vmatprep.mubr.f32.mxu0 0.0
  %1261 = vmatmul.mubr.f32.gmra.mrb[0].mxu0 %v1112
  %v1262 = vpop.f32.mrb[0].mxu0
  %v1263 = vadd.f32 %v1095, %v1262
  %v1264 = vpop.f32.mrb[0].mxu0
  %1265 = vmatprep.mubr.f32.mxu0 0.0
  %1266 = vmatmul.mubr.f32.gmra.mrb[0].mxu0 %v1115
  %v1267 = vpop.f32.mrb[0].mxu0
  %v1268 = vadd.f32 %v1095, %v1267
  %v1269 = vpop.f32.mrb[0].mxu0
  %1270 = vmatprep.mubr.f32.mxu0 0.0
  %1271 = vmatmul.mubr.f32.gmra.mrb[0].mxu0 %v1118
  %v1272 = vpop.f32.mrb[0].mxu0
  %v1273 = vadd.f32 %v1095, %v1272
  %v1274 = vpop.f32.mrb[0].mxu0
  %1275 = vmatprep.mubr.f32.mxu0 0.0
  %1276 = vmatmul.mubr.f32.gmra.mrb[0].mxu0 %v1121
  %v1277 = vpop.f32.mrb[0].mxu0
  %v1278 = vadd.f32 %v1095, %v1277
  %v1279 = vpop.f32.mrb[0].mxu0
  %1280 = vmatprep.mubr.f32.mxu0 0.0
  %1281 = vmatmul.mubr.f32.gmra.mrb[0].mxu0 %v1124
  %v1282 = vpop.f32.mrb[0].mxu0
  %v1283 = vadd.f32 %v1095, %v1282
  %v1284 = vpop.f32.mrb[0].mxu0
  %1285 = vmatprep.mubr.f32.mxu0 0.0
  %1286 = vmatmul.mubr.f32.gmra.mrb[0].mxu0 %v1127
  %v1287 = vpop.f32.mrb[0].mxu0
  %v1288 = vadd.f32 %v1095, %v1287
  %v1289 = vpop.f32.mrb[0].mxu0
  %1290 = vmatprep.mubr.f32.mxu0 0.0
  %1291 = vmatmul.mubr.f32.gmra.mrb[0].mxu0 %v1130
  %v1292 = vpop.f32.mrb[0].mxu0
  %v1293 = vadd.f32 %v1095, %v1292
  %v1294 = vpop.f32.mrb[0].mxu0
  %1295 = vmatprep.mubr.f32.mxu0 0.0
  %1296 = vmatmul.mubr.f32.gmra.mrb[0].mxu0 %v1133
  %v1297 = vpop.f32.mrb[0].mxu0
  %v1298 = vadd.f32 %v1095, %v1297
  %v1299 = vpop.f32.mrb[0].mxu0
  %1300 = vmatprep.mubr.f32.mxu0 0.0
  %1301 = vmatmul.mubr.f32.gmra.mrb[0].mxu0 %v1136
  %v1302 = vpop.f32.mrb[0].mxu0
  %v1303 = vadd.f32 %v1095, %v1302
  %v1304 = vpop.f32.mrb[0].mxu0
  %1305 = vmatprep.mubr.f32.mxu0 0.0
  %1306 = vmatmul.mubr.f32.gmra.mrb[0].mxu0 %v1139
  %v1307 = vpop.f32.mrb[0].mxu0
  %v1308 = vadd.f32 %v1095, %v1307
  %v1309 = vpop.f32.mrb[0].mxu0
  %1310 = vmatprep.mubr.f32.mxu0 0.0
  %1311 = vmatmul.mubr.f32.gmra.mrb[0].mxu0 %v1142
  %v1312 = vpop.f32.mrb[0].mxu0
  %v1313 = vadd.f32 %v1095, %v1312
  %v1314 = vpop.f32.mrb[0].mxu0
  %1315 = vmatprep.mubr.f32.mxu0 0.0
  %1316 = vmatmul.mubr.f32.gmra.mrb[0].mxu0 %v1145
  %v1317 = vpop.f32.mrb[0].mxu0
  %v1318 = vadd.f32 %v1095, %v1317
  %v1319 = vpop.f32.mrb[0].mxu0
  %1320 = vmatprep.mubr.f32.mxu0 0.0
  %1321 = vmatmul.mubr.f32.gmra.mrb[0].mxu0 %v1148
  %v1322 = vpop.f32.mrb[0].mxu0
  %v1323 = vadd.f32 %v1095, %v1322
  %v1324 = vpop.f32.mrb[0].mxu0
  %1325 = vmatprep.mubr.f32.mxu0 0.0
  %1326 = vmatmul.mubr.f32.gmra.mrb[0].mxu0 %v1151
  %v1327 = vpop.f32.mrb[0].mxu0
  %v1328 = vadd.f32 %v1095, %v1327
  %v1329 = vpop.f32.mrb[0].mxu0
  %1330 = vmatprep.mubr.f32.mxu0 0.0
  %1331 = vmatmul.mubr.f32.gmra.mrb[0].mxu0 %v1154
  %v1332 = vpop.f32.mrb[0].mxu0
  %v1333 = vadd.f32 %v1095, %v1332
  %v1334 = vpop.f32.mrb[0].mxu0
  %1335 = vmatprep.mubr.f32.mxu0 0.0
  %1336 = vmatmul.mubr.f32.gmra.mrb[0].mxu0 %v1157
  %v1337 = vpop.f32.mrb[0].mxu0
  %v1338 = vadd.f32 %v1095, %v1337
  %v1339 = vpop.f32.mrb[0].mxu0
  %1340 = vmatprep.mubr.f32.mxu0 0.0
  %1341 = vmatmul.mubr.f32.gmra.mrb[0].mxu0 %v1160
  %v1342 = vpop.f32.mrb[0].mxu0
  %v1343 = vadd.f32 %v1095, %v1342
  %v1344 = vpop.f32.mrb[0].mxu0
  %1345 = vmatprep.mubr.f32.mxu0 0.0
  %1346 = vmatmul.mubr.f32.gmra.mrb[0].mxu0 %v1163
  %v1347 = vpop.f32.mrb[0].mxu0
  %v1348 = vadd.f32 %v1095, %v1347
  %v1349 = vpop.f32.mrb[0].mxu0
  %1350 = vmatprep.mubr.f32.mxu0 0.0
  %1351 = vmatmul.mubr.f32.gmra.mrb[0].mxu0 %v1166
  %v1352 = vpop.f32.mrb[0].mxu0
  %v1353 = vadd.f32 %v1095, %v1352
  %v1354 = vpop.f32.mrb[0].mxu0
  %1355 = vmatprep.mubr.f32.mxu0 0.0
  %1356 = vmatmul.mubr.f32.gmra.mrb[0].mxu0 %v1169
  %v1357 = vpop.f32.mrb[0].mxu0
  %v1358 = vadd.f32 %v1095, %v1357
  %v1359 = vpop.f32.mrb[0].mxu0
  %1360 = vdwg.mxu0
  %v1361 = vmax.f32 %v1238, 0.0
  %v1362 = vmax.f32 %v1243, 0.0
  %v1363 = vmax.f32 %v1248, 0.0
  %v1364 = vmax.f32 %v1253, 0.0
  %v1365 = vmax.f32 %v1258, 0.0
  %v1366 = vmax.f32 %v1263, 0.0
  %v1367 = vmax.f32 %v1268, 0.0
  %v1368 = vmax.f32 %v1273, 0.0
  %v1369 = vmax.f32 %v1278, 0.0
  %v1370 = vmax.f32 %v1283, 0.0
  %v1371 = vmax.f32 %v1288, 0.0
  %v1372 = vmax.f32 %v1293, 0.0
  %v1373 = vmax.f32 %v1298, 0.0
  %v1374 = vmax.f32 %v1303, 0.0
  %v1375 = vmax.f32 %v1308, 0.0
  %v1376 = vmax.f32 %v1313, 0.0
  %v1377 = vmax.f32 %v1318, 0.0
  %v1378 = vmax.f32 %v1323, 0.0
  %v1379 = vmax.f32 %v1328, 0.0
  %v1380 = vmax.f32 %v1333, 0.0
  %v1381 = vmax.f32 %v1338, 0.0
  %v1382 = vmax.f32 %v1343, 0.0
  %v1383 = vmax.f32 %v1348, 0.0
  %v1384 = vmax.f32 %v1353, 0.0
  %v1385 = vmax.f32 %v1358, 0.0
  %v1386 = vld [vmem:[%s1 + $0x80] sm:$0xff]
  %v1387 = vld [vmem:[%s1 + $0x88] sm:$0xff]
  %v1388 = vld [vmem:[%s1 + $0x90] sm:$0xff]
  %v1389 = vld [vmem:[%s1 + $0x98] sm:$0xff]
  %v1390 = vld [vmem:[%s2 + $0x4] sm:$0x1]
  %v1391 = vlaneseq
  %v1392 = vshrl.u32 %v1391, 7
  %v1393 = vsub.s32 0, %v1392
  %v1394 = vrot.slane %v1390, %v1393
  %v1396 = vsel %vm372, %v1361, 0
  %v1399 = vsel %vm372, %v1362, 0
  %v1402 = vsel %vm372, %v1363, 0
  %v1405 = vsel %vm372, %v1364, 0
  %v1408 = vsel %vm372, %v1365, 0
  %v1411 = vsel %vm372, %v1366, 0
  %v1414 = vsel %vm372, %v1367, 0
  %v1417 = vsel %vm372, %v1368, 0
  %v1420 = vsel %vm372, %v1369, 0
  %v1423 = vsel %vm372, %v1370, 0
  %v1426 = vsel %vm372, %v1371, 0
  %v1429 = vsel %vm372, %v1372, 0
  %v1432 = vsel %vm372, %v1373, 0
  %v1435 = vsel %vm372, %v1374, 0
  %v1438 = vsel %vm372, %v1375, 0
  %v1441 = vsel %vm372, %v1376, 0
  %v1444 = vsel %vm372, %v1377, 0
  %v1447 = vsel %vm372, %v1378, 0
  %v1450 = vsel %vm372, %v1379, 0
  %v1453 = vsel %vm372, %v1380, 0
  %v1456 = vsel %vm372, %v1381, 0
  %v1459 = vsel %vm372, %v1382, 0
  %v1462 = vsel %vm372, %v1383, 0
  %v1465 = vsel %vm372, %v1384, 0
  %v1468 = vsel %vm372, %v1385, 0
  %1470 = vmatprep.subr.mxu0 0.0
  %1471 = vmatpush1.msra.mxu0 %v1386
  %1472 = vmatprep.subr.mxu0 0.0
  %1473 = vmatpush1.msra.mxu0 %v1387
  %1474 = vmatprep.subr.mxu0 0.0
  %1475 = vmatpush1.msra.mxu0 %v1388
  %1476 = vmatprep.subr.mxu0 0.0
  %1477 = vmatpush1.msra.mxu0 %v1389
  %1478 = vmatprep.subr.mxu0 0.0
  %1479 = vmatpush1.msra.mxu0 0.0
  %1480 = vmatprep.subr.mxu0 0.0
  %1481 = vmatpush1.msra.mxu0 0.0
  %1482 = vmatprep.subr.mxu0 0.0
  %1483 = vmatpush1.msra.mxu0 0.0
  %1484 = vmatprep.subr.mxu0 0.0
  %1485 = vmatpush1.msra.mxu0 0.0
  %1486 = vmatprep.subr.mxu0 0.0
  %1487 = vmatpush1.msra.mxu0 0.0
  %1488 = vmatprep.subr.mxu0 0.0
  %1489 = vmatpush1.msra.mxu0 0.0
  %1490 = vmatprep.subr.mxu0 0.0
  %1491 = vmatpush1.msra.mxu0 0.0
  %1492 = vmatprep.subr.mxu0 0.0
  %1493 = vmatpush1.msra.mxu0 0.0
  %1494 = vmatprep.subr.mxu0 0.0
  %1495 = vmatpush1.msra.mxu0 0.0
  %1496 = vmatprep.subr.mxu0 0.0
  %1497 = vmatpush1.msra.mxu0 0.0
  %1498 = vmatprep.subr.mxu0 0.0
  %1499 = vmatpush1.msra.mxu0 0.0
  %1500 = vmatprep.subr.mxu0 0.0
  %1501 = vmatpush1.msra.mxu0 0.0
  %1502 = vmatprep.subr.mxu0 0.0
  %1503 = vmatpush1.msra.mxu0 0.0
  %1504 = vmatprep.subr.mxu0 0.0
  %1505 = vmatpush1.msra.mxu0 0.0
  %1506 = vmatprep.subr.mxu0 0.0
  %1507 = vmatpush1.msra.mxu0 0.0
  %1508 = vmatprep.subr.mxu0 0.0
  %1509 = vmatpush1.msra.mxu0 0.0
  %1510 = vmatprep.subr.mxu0 0.0
  %1511 = vmatpush1.msra.mxu0 0.0
  %1512 = vmatprep.subr.mxu0 0.0
  %1513 = vmatpush1.msra.mxu0 0.0
  %1514 = vmatprep.subr.mxu0 0.0
  %1515 = vmatpush1.msra.mxu0 0.0
  %1516 = vmatprep.subr.mxu0 0.0
  %1517 = vmatpush1.msra.mxu0 0.0
  %1518 = vmatprep.subr.mxu0 0.0
  %1519 = vmatpush1.msra.mxu0 0.0
  %1520 = vmatprep.subr.mxu0 0.0
  %1521 = vmatpush1.msra.mxu0 0.0
  %1522 = vmatprep.subr.mxu0 0.0
  %1523 = vmatpush1.msra.mxu0 0.0
  %1524 = vmatprep.subr.mxu0 0.0
  %1525 = vmatpush1.msra.mxu0 0.0
  %1526 = vmatprep.subr.mxu0 0.0
  %1527 = vmatpush1.msra.mxu0 0.0
  %1528 = vmatprep.subr.mxu0 0.0
  %1529 = vmatpush1.msra.mxu0 0.0
  %1530 = vmatprep.subr.mxu0 0.0
  %1531 = vmatpush1.msra.mxu0 0.0
  %1532 = vmatprep.subr.mxu0 0.0
  %1533 = vmatpush1.msra.mxu0 0.0
  %1534 = vmatprep.mubr.f32.mxu0 0.0
  %1535 = vmatmul.mubr.f32.gmra.mrb[0].mxu0 %v1396
  %v1536 = vpop.f32.mrb[0].mxu0
  %v1537 = vadd.f32 %v1394, %v1536
  %v1538 = vpop.f32.mrb[0].mxu0
  %1539 = vmatprep.mubr.f32.mxu0 0.0
  %1540 = vmatmul.mubr.f32.gmra.mrb[0].mxu0 %v1399
  %v1541 = vpop.f32.mrb[0].mxu0
  %v1542 = vadd.f32 %v1394, %v1541
  %v1543 = vpop.f32.mrb[0].mxu0
  %1544 = vmatprep.mubr.f32.mxu0 0.0
  %1545 = vmatmul.mubr.f32.gmra.mrb[0].mxu0 %v1402
  %v1546 = vpop.f32.mrb[0].mxu0
  %v1547 = vadd.f32 %v1394, %v1546
  %v1548 = vpop.f32.mrb[0].mxu0
  %1549 = vmatprep.mubr.f32.mxu0 0.0
  %1550 = vmatmul.mubr.f32.gmra.mrb[0].mxu0 %v1405
  %v1551 = vpop.f32.mrb[0].mxu0
  %v1552 = vadd.f32 %v1394, %v1551
  %v1553 = vpop.f32.mrb[0].mxu0
  %1554 = vmatprep.mubr.f32.mxu0 0.0
  %1555 = vmatmul.mubr.f32.gmra.mrb[0].mxu0 %v1408
  %v1556 = vpop.f32.mrb[0].mxu0
  %v1557 = vadd.f32 %v1394, %v1556
  %v1558 = vpop.f32.mrb[0].mxu0
  %1559 = vmatprep.mubr.f32.mxu0 0.0
  %1560 = vmatmul.mubr.f32.gmra.mrb[0].mxu0 %v1411
  %v1561 = vpop.f32.mrb[0].mxu0
  %v1562 = vadd.f32 %v1394, %v1561
  %v1563 = vpop.f32.mrb[0].mxu0
  %1564 = vmatprep.mubr.f32.mxu0 0.0
  %1565 = vmatmul.mubr.f32.gmra.mrb[0].mxu0 %v1414
  %v1566 = vpop.f32.mrb[0].mxu0
  %v1567 = vadd.f32 %v1394, %v1566
  %v1568 = vpop.f32.mrb[0].mxu0
  %1569 = vmatprep.mubr.f32.mxu0 0.0
  %1570 = vmatmul.mubr.f32.gmra.mrb[0].mxu0 %v1417
  %v1571 = vpop.f32.mrb[0].mxu0
  %v1572 = vadd.f32 %v1394, %v1571
  %v1573 = vpop.f32.mrb[0].mxu0
  %1574 = vmatprep.mubr.f32.mxu0 0.0
  %1575 = vmatmul.mubr.f32.gmra.mrb[0].mxu0 %v1420
  %v1576 = vpop.f32.mrb[0].mxu0
  %v1577 = vadd.f32 %v1394, %v1576
  %v1578 = vpop.f32.mrb[0].mxu0
  %1579 = vmatprep.mubr.f32.mxu0 0.0
  %1580 = vmatmul.mubr.f32.gmra.mrb[0].mxu0 %v1423
  %v1581 = vpop.f32.mrb[0].mxu0
  %v1582 = vadd.f32 %v1394, %v1581
  %v1583 = vpop.f32.mrb[0].mxu0
  %1584 = vmatprep.mubr.f32.mxu0 0.0
  %1585 = vmatmul.mubr.f32.gmra.mrb[0].mxu0 %v1426
  %v1586 = vpop.f32.mrb[0].mxu0
  %v1587 = vadd.f32 %v1394, %v1586
  %v1588 = vpop.f32.mrb[0].mxu0
  %1589 = vmatprep.mubr.f32.mxu0 0.0
  %1590 = vmatmul.mubr.f32.gmra.mrb[0].mxu0 %v1429
  %v1591 = vpop.f32.mrb[0].mxu0
  %v1592 = vadd.f32 %v1394, %v1591
  %v1593 = vpop.f32.mrb[0].mxu0
  %1594 = vmatprep.mubr.f32.mxu0 0.0
  %1595 = vmatmul.mubr.f32.gmra.mrb[0].mxu0 %v1432
  %v1596 = vpop.f32.mrb[0].mxu0
  %v1597 = vadd.f32 %v1394, %v1596
  %v1598 = vpop.f32.mrb[0].mxu0
  %1599 = vmatprep.mubr.f32.mxu0 0.0
  %1600 = vmatmul.mubr.f32.gmra.mrb[0].mxu0 %v1435
  %v1601 = vpop.f32.mrb[0].mxu0
  %v1602 = vadd.f32 %v1394, %v1601
  %v1603 = vpop.f32.mrb[0].mxu0
  %1604 = vmatprep.mubr.f32.mxu0 0.0
  %1605 = vmatmul.mubr.f32.gmra.mrb[0].mxu0 %v1438
  %v1606 = vpop.f32.mrb[0].mxu0
  %v1607 = vadd.f32 %v1394, %v1606
  %v1608 = vpop.f32.mrb[0].mxu0
  %1609 = vmatprep.mubr.f32.mxu0 0.0
  %1610 = vmatmul.mubr.f32.gmra.mrb[0].mxu0 %v1441
  %v1611 = vpop.f32.mrb[0].mxu0
  %v1612 = vadd.f32 %v1394, %v1611
  %v1613 = vpop.f32.mrb[0].mxu0
  %1614 = vmatprep.mubr.f32.mxu0 0.0
  %1615 = vmatmul.mubr.f32.gmra.mrb[0].mxu0 %v1444
  %v1616 = vpop.f32.mrb[0].mxu0
  %v1617 = vadd.f32 %v1394, %v1616
  %v1618 = vpop.f32.mrb[0].mxu0
  %1619 = vmatprep.mubr.f32.mxu0 0.0
  %1620 = vmatmul.mubr.f32.gmra.mrb[0].mxu0 %v1447
  %v1621 = vpop.f32.mrb[0].mxu0
  %v1622 = vadd.f32 %v1394, %v1621
  %v1623 = vpop.f32.mrb[0].mxu0
  %1624 = vmatprep.mubr.f32.mxu0 0.0
  %1625 = vmatmul.mubr.f32.gmra.mrb[0].mxu0 %v1450
  %v1626 = vpop.f32.mrb[0].mxu0
  %v1627 = vadd.f32 %v1394, %v1626
  %v1628 = vpop.f32.mrb[0].mxu0
  %1629 = vmatprep.mubr.f32.mxu0 0.0
  %1630 = vmatmul.mubr.f32.gmra.mrb[0].mxu0 %v1453
  %v1631 = vpop.f32.mrb[0].mxu0
  %v1632 = vadd.f32 %v1394, %v1631
  %v1633 = vpop.f32.mrb[0].mxu0
  %1634 = vmatprep.mubr.f32.mxu0 0.0
  %1635 = vmatmul.mubr.f32.gmra.mrb[0].mxu0 %v1456
  %v1636 = vpop.f32.mrb[0].mxu0
  %v1637 = vadd.f32 %v1394, %v1636
  %v1638 = vpop.f32.mrb[0].mxu0
  %1639 = vmatprep.mubr.f32.mxu0 0.0
  %1640 = vmatmul.mubr.f32.gmra.mrb[0].mxu0 %v1459
  %v1641 = vpop.f32.mrb[0].mxu0
  %v1642 = vadd.f32 %v1394, %v1641
  %v1643 = vpop.f32.mrb[0].mxu0
  %1644 = vmatprep.mubr.f32.mxu0 0.0
  %1645 = vmatmul.mubr.f32.gmra.mrb[0].mxu0 %v1462
  %v1646 = vpop.f32.mrb[0].mxu0
  %v1647 = vadd.f32 %v1394, %v1646
  %v1648 = vpop.f32.mrb[0].mxu0
  %1649 = vmatprep.mubr.f32.mxu0 0.0
  %1650 = vmatmul.mubr.f32.gmra.mrb[0].mxu0 %v1465
  %v1651 = vpop.f32.mrb[0].mxu0
  %v1652 = vadd.f32 %v1394, %v1651
  %v1653 = vpop.f32.mrb[0].mxu0
  %1654 = vmatprep.mubr.f32.mxu0 0.0
  %1655 = vmatmul.mubr.f32.gmra.mrb[0].mxu0 %v1468
  %v1656 = vpop.f32.mrb[0].mxu0
  %v1657 = vadd.f32 %v1394, %v1656
  %v1658 = vpop.f32.mrb[0].mxu0
  %1659 = vdwg.mxu0
  %v1660 = vld [vmem:[%s1 + $0xa0] sm:$0xff]
  %v1661 = vld [vmem:[%s1 + $0xa8] sm:$0xff]
  %v1662 = vld [vmem:[%s1 + $0xb0] sm:$0xff]
  %v1663 = vld [vmem:[%s1 + $0xb8] sm:$0xff]
  %1664 = vrot.lane.b32.xlu0 %v185, 64
  %v1665 = vpop.permute.xlu0 %1664
  %1666 = vrot.lane.b32.xlu0 %v190, 64
  %v1667 = vpop.permute.xlu0 %1666
  %1668 = vrot.lane.b32.xlu0 %v195, 64
  %v1669 = vpop.permute.xlu0 %1668
  %1670 = vrot.lane.b32.xlu0 %v200, 64
  %v1671 = vpop.permute.xlu0 %1670
  %1672 = vrot.lane.b32.xlu0 %v205, 64
  %v1673 = vpop.permute.xlu0 %1672
  %1674 = vrot.lane.b32.xlu0 %v210, 64
  %v1675 = vpop.permute.xlu0 %1674
  %1676 = vrot.lane.b32.xlu0 %v215, 64
  %v1677 = vpop.permute.xlu0 %1676
  %1678 = vrot.lane.b32.xlu0 %v220, 64
  %v1679 = vpop.permute.xlu0 %1678
  %1680 = vrot.lane.b32.xlu0 %v225, 64
  %v1681 = vpop.permute.xlu0 %1680
  %1682 = vrot.lane.b32.xlu0 %v230, 64
  %v1683 = vpop.permute.xlu0 %1682
  %1684 = vrot.lane.b32.xlu0 %v235, 64
  %v1685 = vpop.permute.xlu0 %1684
  %1686 = vrot.lane.b32.xlu0 %v240, 64
  %v1687 = vpop.permute.xlu0 %1686
  %1688 = vrot.lane.b32.xlu0 %v245, 64
  %v1689 = vpop.permute.xlu0 %1688
  %1690 = vrot.lane.b32.xlu0 %v250, 64
  %v1691 = vpop.permute.xlu0 %1690
  %1692 = vrot.lane.b32.xlu0 %v255, 64
  %v1693 = vpop.permute.xlu0 %1692
  %1694 = vrot.lane.b32.xlu0 %v260, 64
  %v1695 = vpop.permute.xlu0 %1694
  %1696 = vrot.lane.b32.xlu0 %v265, 64
  %v1697 = vpop.permute.xlu0 %1696
  %1698 = vrot.lane.b32.xlu0 %v270, 64
  %v1699 = vpop.permute.xlu0 %1698
  %1700 = vrot.lane.b32.xlu0 %v275, 64
  %v1701 = vpop.permute.xlu0 %1700
  %1702 = vrot.lane.b32.xlu0 %v280, 64
  %v1703 = vpop.permute.xlu0 %1702
  %1704 = vrot.lane.b32.xlu0 %v285, 64
  %v1705 = vpop.permute.xlu0 %1704
  %1706 = vrot.lane.b32.xlu0 %v290, 64
  %v1707 = vpop.permute.xlu0 %1706
  %1708 = vrot.lane.b32.xlu0 %v295, 64
  %v1709 = vpop.permute.xlu0 %1708
  %1710 = vrot.lane.b32.xlu0 %v300, 64
  %v1711 = vpop.permute.xlu0 %1710
  %1712 = vrot.lane.b32.xlu0 %v305, 64
  %v1713 = vpop.permute.xlu0 %1712
  %v1740 = vsel %vm372, %v1537, 0
  %v1743 = vsel %vm372, %v1542, 0
  %v1746 = vsel %vm372, %v1547, 0
  %v1749 = vsel %vm372, %v1552, 0
  %v1752 = vsel %vm372, %v1557, 0
  %v1755 = vsel %vm372, %v1562, 0
  %v1758 = vsel %vm372, %v1567, 0
  %v1761 = vsel %vm372, %v1572, 0
  %v1764 = vsel %vm372, %v1577, 0
  %v1767 = vsel %vm372, %v1582, 0
  %v1770 = vsel %vm372, %v1587, 0
  %v1773 = vsel %vm372, %v1592, 0
  %v1776 = vsel %vm372, %v1597, 0
  %v1779 = vsel %vm372, %v1602, 0
  %v1782 = vsel %vm372, %v1607, 0
  %v1785 = vsel %vm372, %v1612, 0
  %v1788 = vsel %vm372, %v1617, 0
  %v1791 = vsel %vm372, %v1622, 0
  %v1794 = vsel %vm372, %v1627, 0
  %v1797 = vsel %vm372, %v1632, 0
  %v1800 = vsel %vm372, %v1637, 0
  %v1803 = vsel %vm372, %v1642, 0
  %v1806 = vsel %vm372, %v1647, 0
  %v1809 = vsel %vm372, %v1652, 0
  %v1812 = vsel %vm372, %v1657, 0
  %1814 = vmatprep.subr.mxu0 0.0
  %1815 = vmatpush1.msra.mxu0 %v1660
  %1816 = vmatprep.subr.mxu0 0.0
  %1817 = vmatpush1.msra.mxu0 %v1661
  %1818 = vmatprep.subr.mxu0 0.0
  %1819 = vmatpush1.msra.mxu0 %v1662
  %1820 = vmatprep.subr.mxu0 0.0
  %1821 = vmatpush1.msra.mxu0 %v1663
  %1822 = vmatprep.subr.mxu0 0.0
  %1823 = vmatpush1.msra.mxu0 0.0
  %1824 = vmatprep.subr.mxu0 0.0
  %1825 = vmatpush1.msra.mxu0 0.0
  %1826 = vmatprep.subr.mxu0 0.0
  %1827 = vmatpush1.msra.mxu0 0.0
  %1828 = vmatprep.subr.mxu0 0.0
  %1829 = vmatpush1.msra.mxu0 0.0
  %1830 = vmatprep.subr.mxu0 0.0
  %1831 = vmatpush1.msra.mxu0 0.0
  %1832 = vmatprep.subr.mxu0 0.0
  %1833 = vmatpush1.msra.mxu0 0.0
  %1834 = vmatprep.subr.mxu0 0.0
  %1835 = vmatpush1.msra.mxu0 0.0
  %1836 = vmatprep.subr.mxu0 0.0
  %1837 = vmatpush1.msra.mxu0 0.0
  %1838 = vmatprep.subr.mxu0 0.0
  %1839 = vmatpush1.msra.mxu0 0.0
  %1840 = vmatprep.subr.mxu0 0.0
  %1841 = vmatpush1.msra.mxu0 0.0
  %1842 = vmatprep.subr.mxu0 0.0
  %1843 = vmatpush1.msra.mxu0 0.0
  %1844 = vmatprep.subr.mxu0 0.0
  %1845 = vmatpush1.msra.mxu0 0.0
  %1846 = vmatprep.subr.mxu0 0.0
  %1847 = vmatpush1.msra.mxu0 0.0
  %1848 = vmatprep.subr.mxu0 0.0
  %1849 = vmatpush1.msra.mxu0 0.0
  %1850 = vmatprep.subr.mxu0 0.0
  %1851 = vmatpush1.msra.mxu0 0.0
  %1852 = vmatprep.subr.mxu0 0.0
  %1853 = vmatpush1.msra.mxu0 0.0
  %1854 = vmatprep.subr.mxu0 0.0
  %1855 = vmatpush1.msra.mxu0 0.0
  %1856 = vmatprep.subr.mxu0 0.0
  %1857 = vmatpush1.msra.mxu0 0.0
  %1858 = vmatprep.subr.mxu0 0.0
  %1859 = vmatpush1.msra.mxu0 0.0
  %1860 = vmatprep.subr.mxu0 0.0
  %1861 = vmatpush1.msra.mxu0 0.0
  %1862 = vmatprep.subr.mxu0 0.0
  %1863 = vmatpush1.msra.mxu0 0.0
  %1864 = vmatprep.subr.mxu0 0.0
  %1865 = vmatpush1.msra.mxu0 0.0
  %1866 = vmatprep.subr.mxu0 0.0
  %1867 = vmatpush1.msra.mxu0 0.0
  %1868 = vmatprep.subr.mxu0 0.0
  %1869 = vmatpush1.msra.mxu0 0.0
  %1870 = vmatprep.subr.mxu0 0.0
  %1871 = vmatpush1.msra.mxu0 0.0
  %1872 = vmatprep.subr.mxu0 0.0
  %1873 = vmatpush1.msra.mxu0 0.0
  %1874 = vmatprep.subr.mxu0 0.0
  %1875 = vmatpush1.msra.mxu0 0.0
  %1876 = vmatprep.subr.mxu0 0.0
  %1877 = vmatpush1.msra.mxu0 0.0
  %1878 = vmatprep.mubr.f32.mxu0 0.0
  %1879 = vmatmul.mubr.f32.gmra.mrb[0].mxu0 %v1740
  %v1880 = vpop.f32.mrb[0].mxu0
  %v1881 = vadd.f32 %v1665, %v1880
  %v1882 = vpop.f32.mrb[0].mxu0
  %1883 = vmatprep.mubr.f32.mxu0 0.0
  %1884 = vmatmul.mubr.f32.gmra.mrb[0].mxu0 %v1743
  %v1885 = vpop.f32.mrb[0].mxu0
  %v1886 = vadd.f32 %v1667, %v1885
  %v1887 = vpop.f32.mrb[0].mxu0
  %1888 = vmatprep.mubr.f32.mxu0 0.0
  %1889 = vmatmul.mubr.f32.gmra.mrb[0].mxu0 %v1746
  %v1890 = vpop.f32.mrb[0].mxu0
  %v1891 = vadd.f32 %v1669, %v1890
  %v1892 = vpop.f32.mrb[0].mxu0
  %1893 = vmatprep.mubr.f32.mxu0 0.0
  %1894 = vmatmul.mubr.f32.gmra.mrb[0].mxu0 %v1749
  %v1895 = vpop.f32.mrb[0].mxu0
  %v1896 = vadd.f32 %v1671, %v1895
  %v1897 = vpop.f32.mrb[0].mxu0
  %1898 = vmatprep.mubr.f32.mxu0 0.0
  %1899 = vmatmul.mubr.f32.gmra.mrb[0].mxu0 %v1752
  %v1900 = vpop.f32.mrb[0].mxu0
  %v1901 = vadd.f32 %v1673, %v1900
  %v1902 = vpop.f32.mrb[0].mxu0
  %1903 = vmatprep.mubr.f32.mxu0 0.0
  %1904 = vmatmul.mubr.f32.gmra.mrb[0].mxu0 %v1755
  %v1905 = vpop.f32.mrb[0].mxu0
  %v1906 = vadd.f32 %v1675, %v1905
  %v1907 = vpop.f32.mrb[0].mxu0
  %1908 = vmatprep.mubr.f32.mxu0 0.0
  %1909 = vmatmul.mubr.f32.gmra.mrb[0].mxu0 %v1758
  %v1910 = vpop.f32.mrb[0].mxu0
  %v1911 = vadd.f32 %v1677, %v1910
  %v1912 = vpop.f32.mrb[0].mxu0
  %1913 = vmatprep.mubr.f32.mxu0 0.0
  %1914 = vmatmul.mubr.f32.gmra.mrb[0].mxu0 %v1761
  %v1915 = vpop.f32.mrb[0].mxu0
  %v1916 = vadd.f32 %v1679, %v1915
  %v1917 = vpop.f32.mrb[0].mxu0
  %1918 = vmatprep.mubr.f32.mxu0 0.0
  %1919 = vmatmul.mubr.f32.gmra.mrb[0].mxu0 %v1764
  %v1920 = vpop.f32.mrb[0].mxu0
  %v1921 = vadd.f32 %v1681, %v1920
  %v1922 = vpop.f32.mrb[0].mxu0
  %1923 = vmatprep.mubr.f32.mxu0 0.0
  %1924 = vmatmul.mubr.f32.gmra.mrb[0].mxu0 %v1767
  %v1925 = vpop.f32.mrb[0].mxu0
  %v1926 = vadd.f32 %v1683, %v1925
  %v1927 = vpop.f32.mrb[0].mxu0
  %1928 = vmatprep.mubr.f32.mxu0 0.0
  %1929 = vmatmul.mubr.f32.gmra.mrb[0].mxu0 %v1770
  %v1930 = vpop.f32.mrb[0].mxu0
  %v1931 = vadd.f32 %v1685, %v1930
  %v1932 = vpop.f32.mrb[0].mxu0
  %1933 = vmatprep.mubr.f32.mxu0 0.0
  %1934 = vmatmul.mubr.f32.gmra.mrb[0].mxu0 %v1773
  %v1935 = vpop.f32.mrb[0].mxu0
  %v1936 = vadd.f32 %v1687, %v1935
  %v1937 = vpop.f32.mrb[0].mxu0
  %1938 = vmatprep.mubr.f32.mxu0 0.0
  %1939 = vmatmul.mubr.f32.gmra.mrb[0].mxu0 %v1776
  %v1940 = vpop.f32.mrb[0].mxu0
  %v1941 = vadd.f32 %v1689, %v1940
  %v1942 = vpop.f32.mrb[0].mxu0
  %1943 = vmatprep.mubr.f32.mxu0 0.0
  %1944 = vmatmul.mubr.f32.gmra.mrb[0].mxu0 %v1779
  %v1945 = vpop.f32.mrb[0].mxu0
  %v1946 = vadd.f32 %v1691, %v1945
  %v1947 = vpop.f32.mrb[0].mxu0
  %1948 = vmatprep.mubr.f32.mxu0 0.0
  %1949 = vmatmul.mubr.f32.gmra.mrb[0].mxu0 %v1782
  %v1950 = vpop.f32.mrb[0].mxu0
  %v1951 = vadd.f32 %v1693, %v1950
  %v1952 = vpop.f32.mrb[0].mxu0
  %1953 = vmatprep.mubr.f32.mxu0 0.0
  %1954 = vmatmul.mubr.f32.gmra.mrb[0].mxu0 %v1785
  %v1955 = vpop.f32.mrb[0].mxu0
  %v1956 = vadd.f32 %v1695, %v1955
  %v1957 = vpop.f32.mrb[0].mxu0
  %1958 = vmatprep.mubr.f32.mxu0 0.0
  %1959 = vmatmul.mubr.f32.gmra.mrb[0].mxu0 %v1788
  %v1960 = vpop.f32.mrb[0].mxu0
  %v1961 = vadd.f32 %v1697, %v1960
  %v1962 = vpop.f32.mrb[0].mxu0
  %1963 = vmatprep.mubr.f32.mxu0 0.0
  %1964 = vmatmul.mubr.f32.gmra.mrb[0].mxu0 %v1791
  %v1965 = vpop.f32.mrb[0].mxu0
  %v1966 = vadd.f32 %v1699, %v1965
  %v1967 = vpop.f32.mrb[0].mxu0
  %1968 = vmatprep.mubr.f32.mxu0 0.0
  %1969 = vmatmul.mubr.f32.gmra.mrb[0].mxu0 %v1794
  %v1970 = vpop.f32.mrb[0].mxu0
  %v1971 = vadd.f32 %v1701, %v1970
  %v1972 = vpop.f32.mrb[0].mxu0
  %1973 = vmatprep.mubr.f32.mxu0 0.0
  %1974 = vmatmul.mubr.f32.gmra.mrb[0].mxu0 %v1797
  %v1975 = vpop.f32.mrb[0].mxu0
  %v1976 = vadd.f32 %v1703, %v1975
  %v1977 = vpop.f32.mrb[0].mxu0
  %1978 = vmatprep.mubr.f32.mxu0 0.0
  %1979 = vmatmul.mubr.f32.gmra.mrb[0].mxu0 %v1800
  %v1980 = vpop.f32.mrb[0].mxu0
  %v1981 = vadd.f32 %v1705, %v1980
  %v1982 = vpop.f32.mrb[0].mxu0
  %1983 = vmatprep.mubr.f32.mxu0 0.0
  %1984 = vmatmul.mubr.f32.gmra.mrb[0].mxu0 %v1803
  %v1985 = vpop.f32.mrb[0].mxu0
  %v1986 = vadd.f32 %v1707, %v1985
  %v1987 = vpop.f32.mrb[0].mxu0
  %1988 = vmatprep.mubr.f32.mxu0 0.0
  %1989 = vmatmul.mubr.f32.gmra.mrb[0].mxu0 %v1806
  %v1990 = vpop.f32.mrb[0].mxu0
  %v1991 = vadd.f32 %v1709, %v1990
  %v1992 = vpop.f32.mrb[0].mxu0
  %1993 = vmatprep.mubr.f32.mxu0 0.0
  %1994 = vmatmul.mubr.f32.gmra.mrb[0].mxu0 %v1809
  %v1995 = vpop.f32.mrb[0].mxu0
  %v1996 = vadd.f32 %v1711, %v1995
  %v1997 = vpop.f32.mrb[0].mxu0
  %1998 = vmatprep.mubr.f32.mxu0 0.0
  %1999 = vmatmul.mubr.f32.gmra.mrb[0].mxu0 %v1812
  %v2000 = vpop.f32.mrb[0].mxu0
  %v2001 = vadd.f32 %v1713, %v2000
  %v2002 = vpop.f32.mrb[0].mxu0
  %2003 = vdwg.mxu0
  %v2004 = vld [vmem:[%s2 + $0x5] sm:$0x1]
  %v2005 = vlaneseq
  %v2006 = vshrl.u32 %v2005, 7
  %v2007 = vsub.s32 0, %v2006
  %v2008 = vrot.slane %v2004, %v2007
  %v2009 = vadd.f32 %v1881, %v2008
  %v2010 = vadd.f32 %v1886, %v2008
  %v2011 = vadd.f32 %v1891, %v2008
  %v2012 = vadd.f32 %v1896, %v2008
  %v2013 = vadd.f32 %v1901, %v2008
  %v2014 = vadd.f32 %v1906, %v2008
  %v2015 = vadd.f32 %v1911, %v2008
  %v2016 = vadd.f32 %v1916, %v2008
  %v2017 = vadd.f32 %v1921, %v2008
  %v2018 = vadd.f32 %v1926, %v2008
  %v2019 = vadd.f32 %v1931, %v2008
  %v2020 = vadd.f32 %v1936, %v2008
  %v2021 = vadd.f32 %v1941, %v2008
  %v2022 = vadd.f32 %v1946, %v2008
  %v2023 = vadd.f32 %v1951, %v2008
  %v2024 = vadd.f32 %v1956, %v2008
  %v2025 = vadd.f32 %v1961, %v2008
  %v2026 = vadd.f32 %v1966, %v2008
  %v2027 = vadd.f32 %v1971, %v2008
  %v2028 = vadd.f32 %v1976, %v2008
  %v2029 = vadd.f32 %v1981, %v2008
  %v2030 = vadd.f32 %v1986, %v2008
  %v2031 = vadd.f32 %v1991, %v2008
  %v2032 = vadd.f32 %v1996, %v2008
  %v2033 = vadd.f32 %v2001, %v2008
  %v2034 = vmax.f32 %v2009, 0.0
  %v2035 = vmax.f32 %v2010, 0.0
  %v2036 = vmax.f32 %v2011, 0.0
  %v2037 = vmax.f32 %v2012, 0.0
  %v2038 = vmax.f32 %v2013, 0.0
  %v2039 = vmax.f32 %v2014, 0.0
  %v2040 = vmax.f32 %v2015, 0.0
  %v2041 = vmax.f32 %v2016, 0.0
  %v2042 = vmax.f32 %v2017, 0.0
  %v2043 = vmax.f32 %v2018, 0.0
  %v2044 = vmax.f32 %v2019, 0.0
  %v2045 = vmax.f32 %v2020, 0.0
  %v2046 = vmax.f32 %v2021, 0.0
  %v2047 = vmax.f32 %v2022, 0.0
  %v2048 = vmax.f32 %v2023, 0.0
  %v2049 = vmax.f32 %v2024, 0.0
  %v2050 = vmax.f32 %v2025, 0.0
  %v2051 = vmax.f32 %v2026, 0.0
  %v2052 = vmax.f32 %v2027, 0.0
  %v2053 = vmax.f32 %v2028, 0.0
  %v2054 = vmax.f32 %v2029, 0.0
  %v2055 = vmax.f32 %v2030, 0.0
  %v2056 = vmax.f32 %v2031, 0.0
  %v2057 = vmax.f32 %v2032, 0.0
  %v2058 = vmax.f32 %v2033, 0.0
  %v2059 = vld [vmem:[%s1 + $0xc0] sm:$0xff]
  %v2060 = vld [vmem:[%s1 + $0xc8] sm:$0xff]
  %v2061 = vld [vmem:[%s2 + $0x6] sm:$0x1]
  %v2062 = vlaneseq
  %v2063 = vshrl.u32 %v2062, 7
  %v2064 = vsub.s32 0, %v2063
  %v2065 = vrot.slane %v2061, %v2064
  %vm2066 = vcmask 130048
  %v2068 = vsel %vm2066, %v2034, 0
  %v2071 = vsel %vm2066, %v2035, 0
  %v2074 = vsel %vm2066, %v2036, 0
  %v2077 = vsel %vm2066, %v2037, 0
  %v2080 = vsel %vm2066, %v2038, 0
  %v2083 = vsel %vm2066, %v2039, 0
  %v2086 = vsel %vm2066, %v2040, 0
  %v2089 = vsel %vm2066, %v2041, 0
  %v2092 = vsel %vm2066, %v2042, 0
  %v2095 = vsel %vm2066, %v2043, 0
  %v2098 = vsel %vm2066, %v2044, 0
  %v2101 = vsel %vm2066, %v2045, 0
  %v2104 = vsel %vm2066, %v2046, 0
  %v2107 = vsel %vm2066, %v2047, 0
  %v2110 = vsel %vm2066, %v2048, 0
  %v2113 = vsel %vm2066, %v2049, 0
  %v2116 = vsel %vm2066, %v2050, 0
  %v2119 = vsel %vm2066, %v2051, 0
  %v2122 = vsel %vm2066, %v2052, 0
  %v2125 = vsel %vm2066, %v2053, 0
  %v2128 = vsel %vm2066, %v2054, 0
  %v2131 = vsel %vm2066, %v2055, 0
  %v2134 = vsel %vm2066, %v2056, 0
  %v2137 = vsel %vm2066, %v2057, 0
  %v2140 = vsel %vm2066, %v2058, 0
  %2142 = vmatprep.subr.mxu0 0.0
  %2143 = vmatpush1.msra.mxu0 %v2059
  %2144 = vmatprep.subr.mxu0 0.0
  %2145 = vmatpush1.msra.mxu0 %v2060
  %2146 = vmatprep.subr.mxu0 0.0
  %2147 = vmatpush1.msra.mxu0 0.0
  %2148 = vmatprep.subr.mxu0 0.0
  %2149 = vmatpush1.msra.mxu0 0.0
  %2150 = vmatprep.subr.mxu0 0.0
  %2151 = vmatpush1.msra.mxu0 0.0
  %2152 = vmatprep.subr.mxu0 0.0
  %2153 = vmatpush1.msra.mxu0 0.0
  %2154 = vmatprep.subr.mxu0 0.0
  %2155 = vmatpush1.msra.mxu0 0.0
  %2156 = vmatprep.subr.mxu0 0.0
  %2157 = vmatpush1.msra.mxu0 0.0
  %2158 = vmatprep.subr.mxu0 0.0
  %2159 = vmatpush1.msra.mxu0 0.0
  %2160 = vmatprep.subr.mxu0 0.0
  %2161 = vmatpush1.msra.mxu0 0.0
  %2162 = vmatprep.subr.mxu0 0.0
  %2163 = vmatpush1.msra.mxu0 0.0
  %2164 = vmatprep.subr.mxu0 0.0
  %2165 = vmatpush1.msra.mxu0 0.0
  %2166 = vmatprep.subr.mxu0 0.0
  %2167 = vmatpush1.msra.mxu0 0.0
  %2168 = vmatprep.subr.mxu0 0.0
  %2169 = vmatpush1.msra.mxu0 0.0
  %2170 = vmatprep.subr.mxu0 0.0
  %2171 = vmatpush1.msra.mxu0 0.0
  %2172 = vmatprep.subr.mxu0 0.0
  %2173 = vmatpush1.msra.mxu0 0.0
  %2174 = vmatprep.subr.mxu0 0.0
  %2175 = vmatpush1.msra.mxu0 0.0
  %2176 = vmatprep.subr.mxu0 0.0
  %2177 = vmatpush1.msra.mxu0 0.0
  %2178 = vmatprep.subr.mxu0 0.0
  %2179 = vmatpush1.msra.mxu0 0.0
  %2180 = vmatprep.subr.mxu0 0.0
  %2181 = vmatpush1.msra.mxu0 0.0
  %2182 = vmatprep.subr.mxu0 0.0
  %2183 = vmatpush1.msra.mxu0 0.0
  %2184 = vmatprep.subr.mxu0 0.0
  %2185 = vmatpush1.msra.mxu0 0.0
  %2186 = vmatprep.subr.mxu0 0.0
  %2187 = vmatpush1.msra.mxu0 0.0
  %2188 = vmatprep.subr.mxu0 0.0
  %2189 = vmatpush1.msra.mxu0 0.0
  %2190 = vmatprep.subr.mxu0 0.0
  %2191 = vmatpush1.msra.mxu0 0.0
  %2192 = vmatprep.subr.mxu0 0.0
  %2193 = vmatpush1.msra.mxu0 0.0
  %2194 = vmatprep.subr.mxu0 0.0
  %2195 = vmatpush1.msra.mxu0 0.0
  %2196 = vmatprep.subr.mxu0 0.0
  %2197 = vmatpush1.msra.mxu0 0.0
  %2198 = vmatprep.subr.mxu0 0.0
  %2199 = vmatpush1.msra.mxu0 0.0
  %2200 = vmatprep.subr.mxu0 0.0
  %2201 = vmatpush1.msra.mxu0 0.0
  %2202 = vmatprep.subr.mxu0 0.0
  %2203 = vmatpush1.msra.mxu0 0.0
  %2204 = vmatprep.subr.mxu0 0.0
  %2205 = vmatpush1.msra.mxu0 0.0
  %2206 = vmatprep.mubr.f32.mxu0 0.0
  %2207 = vmatmul.mubr.f32.gmra.mrb[0].mxu0 %v2068
  %v2208 = vpop.f32.mrb[0].mxu0
  %v2209 = vadd.f32 %v2065, %v2208
  %v2210 = vpop.f32.mrb[0].mxu0
  %2211 = vmatprep.mubr.f32.mxu0 0.0
  %2212 = vmatmul.mubr.f32.gmra.mrb[0].mxu0 %v2071
  %v2213 = vpop.f32.mrb[0].mxu0
  %v2214 = vadd.f32 %v2065, %v2213
  %v2215 = vpop.f32.mrb[0].mxu0
  %2216 = vmatprep.mubr.f32.mxu0 0.0
  %2217 = vmatmul.mubr.f32.gmra.mrb[0].mxu0 %v2074
  %v2218 = vpop.f32.mrb[0].mxu0
  %v2219 = vadd.f32 %v2065, %v2218
  %v2220 = vpop.f32.mrb[0].mxu0
  %2221 = vmatprep.mubr.f32.mxu0 0.0
  %2222 = vmatmul.mubr.f32.gmra.mrb[0].mxu0 %v2077
  %v2223 = vpop.f32.mrb[0].mxu0
  %v2224 = vadd.f32 %v2065, %v2223
  %v2225 = vpop.f32.mrb[0].mxu0
  %2226 = vmatprep.mubr.f32.mxu0 0.0
  %2227 = vmatmul.mubr.f32.gmra.mrb[0].mxu0 %v2080
  %v2228 = vpop.f32.mrb[0].mxu0
  %v2229 = vadd.f32 %v2065, %v2228
  %v2230 = vpop.f32.mrb[0].mxu0
  %2231 = vmatprep.mubr.f32.mxu0 0.0
  %2232 = vmatmul.mubr.f32.gmra.mrb[0].mxu0 %v2083
  %v2233 = vpop.f32.mrb[0].mxu0
  %v2234 = vadd.f32 %v2065, %v2233
  %v2235 = vpop.f32.mrb[0].mxu0
  %2236 = vmatprep.mubr.f32.mxu0 0.0
  %2237 = vmatmul.mubr.f32.gmra.mrb[0].mxu0 %v2086
  %v2238 = vpop.f32.mrb[0].mxu0
  %v2239 = vadd.f32 %v2065, %v2238
  %v2240 = vpop.f32.mrb[0].mxu0
  %2241 = vmatprep.mubr.f32.mxu0 0.0
  %2242 = vmatmul.mubr.f32.gmra.mrb[0].mxu0 %v2089
  %v2243 = vpop.f32.mrb[0].mxu0
  %v2244 = vadd.f32 %v2065, %v2243
  %v2245 = vpop.f32.mrb[0].mxu0
  %2246 = vmatprep.mubr.f32.mxu0 0.0
  %2247 = vmatmul.mubr.f32.gmra.mrb[0].mxu0 %v2092
  %v2248 = vpop.f32.mrb[0].mxu0
  %v2249 = vadd.f32 %v2065, %v2248
  %v2250 = vpop.f32.mrb[0].mxu0
  %2251 = vmatprep.mubr.f32.mxu0 0.0
  %2252 = vmatmul.mubr.f32.gmra.mrb[0].mxu0 %v2095
  %v2253 = vpop.f32.mrb[0].mxu0
  %v2254 = vadd.f32 %v2065, %v2253
  %v2255 = vpop.f32.mrb[0].mxu0
  %2256 = vmatprep.mubr.f32.mxu0 0.0
  %2257 = vmatmul.mubr.f32.gmra.mrb[0].mxu0 %v2098
  %v2258 = vpop.f32.mrb[0].mxu0
  %v2259 = vadd.f32 %v2065, %v2258
  %v2260 = vpop.f32.mrb[0].mxu0
  %2261 = vmatprep.mubr.f32.mxu0 0.0
  %2262 = vmatmul.mubr.f32.gmra.mrb[0].mxu0 %v2101
  %v2263 = vpop.f32.mrb[0].mxu0
  %v2264 = vadd.f32 %v2065, %v2263
  %v2265 = vpop.f32.mrb[0].mxu0
  %2266 = vmatprep.mubr.f32.mxu0 0.0
  %2267 = vmatmul.mubr.f32.gmra.mrb[0].mxu0 %v2104
  %v2268 = vpop.f32.mrb[0].mxu0
  %v2269 = vadd.f32 %v2065, %v2268
  %v2270 = vpop.f32.mrb[0].mxu0
  %2271 = vmatprep.mubr.f32.mxu0 0.0
  %2272 = vmatmul.mubr.f32.gmra.mrb[0].mxu0 %v2107
  %v2273 = vpop.f32.mrb[0].mxu0
  %v2274 = vadd.f32 %v2065, %v2273
  %v2275 = vpop.f32.mrb[0].mxu0
  %2276 = vmatprep.mubr.f32.mxu0 0.0
  %2277 = vmatmul.mubr.f32.gmra.mrb[0].mxu0 %v2110
  %v2278 = vpop.f32.mrb[0].mxu0
  %v2279 = vadd.f32 %v2065, %v2278
  %v2280 = vpop.f32.mrb[0].mxu0
  %2281 = vmatprep.mubr.f32.mxu0 0.0
  %2282 = vmatmul.mubr.f32.gmra.mrb[0].mxu0 %v2113
  %v2283 = vpop.f32.mrb[0].mxu0
  %v2284 = vadd.f32 %v2065, %v2283
  %v2285 = vpop.f32.mrb[0].mxu0
  %2286 = vmatprep.mubr.f32.mxu0 0.0
  %2287 = vmatmul.mubr.f32.gmra.mrb[0].mxu0 %v2116
  %v2288 = vpop.f32.mrb[0].mxu0
  %v2289 = vadd.f32 %v2065, %v2288
  %v2290 = vpop.f32.mrb[0].mxu0
  %2291 = vmatprep.mubr.f32.mxu0 0.0
  %2292 = vmatmul.mubr.f32.gmra.mrb[0].mxu0 %v2119
  %v2293 = vpop.f32.mrb[0].mxu0
  %v2294 = vadd.f32 %v2065, %v2293
  %v2295 = vpop.f32.mrb[0].mxu0
  %2296 = vmatprep.mubr.f32.mxu0 0.0
  %2297 = vmatmul.mubr.f32.gmra.mrb[0].mxu0 %v2122
  %v2298 = vpop.f32.mrb[0].mxu0
  %v2299 = vadd.f32 %v2065, %v2298
  %v2300 = vpop.f32.mrb[0].mxu0
  %2301 = vmatprep.mubr.f32.mxu0 0.0
  %2302 = vmatmul.mubr.f32.gmra.mrb[0].mxu0 %v2125
  %v2303 = vpop.f32.mrb[0].mxu0
  %v2304 = vadd.f32 %v2065, %v2303
  %v2305 = vpop.f32.mrb[0].mxu0
  %2306 = vmatprep.mubr.f32.mxu0 0.0
  %2307 = vmatmul.mubr.f32.gmra.mrb[0].mxu0 %v2128
  %v2308 = vpop.f32.mrb[0].mxu0
  %v2309 = vadd.f32 %v2065, %v2308
  %v2310 = vpop.f32.mrb[0].mxu0
  %2311 = vmatprep.mubr.f32.mxu0 0.0
  %2312 = vmatmul.mubr.f32.gmra.mrb[0].mxu0 %v2131
  %v2313 = vpop.f32.mrb[0].mxu0
  %v2314 = vadd.f32 %v2065, %v2313
  %v2315 = vpop.f32.mrb[0].mxu0
  %2316 = vmatprep.mubr.f32.mxu0 0.0
  %2317 = vmatmul.mubr.f32.gmra.mrb[0].mxu0 %v2134
  %v2318 = vpop.f32.mrb[0].mxu0
  %v2319 = vadd.f32 %v2065, %v2318
  %v2320 = vpop.f32.mrb[0].mxu0
  %2321 = vmatprep.mubr.f32.mxu0 0.0
  %2322 = vmatmul.mubr.f32.gmra.mrb[0].mxu0 %v2137
  %v2323 = vpop.f32.mrb[0].mxu0
  %v2324 = vadd.f32 %v2065, %v2323
  %v2325 = vpop.f32.mrb[0].mxu0
  %2326 = vmatprep.mubr.f32.mxu0 0.0
  %2327 = vmatmul.mubr.f32.gmra.mrb[0].mxu0 %v2140
  %v2328 = vpop.f32.mrb[0].mxu0
  %v2329 = vadd.f32 %v2065, %v2328
  %v2330 = vpop.f32.mrb[0].mxu0
  %2331 = vdwg.mxu0
  %v2332 = vxor.u32 %v2209, 2147483648
  %v2333 = vxor.u32 %v2214, 2147483648
  %v2334 = vxor.u32 %v2219, 2147483648
  %v2335 = vxor.u32 %v2224, 2147483648
  %v2336 = vxor.u32 %v2229, 2147483648
  %v2337 = vxor.u32 %v2234, 2147483648
  %v2338 = vxor.u32 %v2239, 2147483648
  %v2339 = vxor.u32 %v2244, 2147483648
  %v2340 = vxor.u32 %v2249, 2147483648
  %v2341 = vxor.u32 %v2254, 2147483648
  %v2342 = vxor.u32 %v2259, 2147483648
  %v2343 = vxor.u32 %v2264, 2147483648
  %v2344 = vxor.u32 %v2269, 2147483648
  %v2345 = vxor.u32 %v2274, 2147483648
  %v2346 = vxor.u32 %v2279, 2147483648
  %v2347 = vxor.u32 %v2284, 2147483648
  %v2348 = vxor.u32 %v2289, 2147483648
  %v2349 = vxor.u32 %v2294, 2147483648
  %v2350 = vxor.u32 %v2299, 2147483648
  %v2351 = vxor.u32 %v2304, 2147483648
  %v2352 = vxor.u32 %v2309, 2147483648
  %v2353 = vxor.u32 %v2314, 2147483648
  %v2354 = vxor.u32 %v2319, 2147483648
  %v2355 = vxor.u32 %v2324, 2147483648
  %v2356 = vxor.u32 %v2329, 2147483648
  %v2357 = vmul.f32 %v2332, 1.442695
  %v2358 = vpow.pop %v2357
  %v2359 = vmul.f32 %v2333, 1.442695
  %v2360 = vpow.pop %v2359
  %v2361 = vmul.f32 %v2334, 1.442695
  %v2362 = vpow.pop %v2361
  %v2363 = vmul.f32 %v2335, 1.442695
  %v2364 = vpow.pop %v2363
  %v2365 = vmul.f32 %v2336, 1.442695
  %v2366 = vpow.pop %v2365
  %v2367 = vmul.f32 %v2337, 1.442695
  %v2368 = vpow.pop %v2367
  %v2369 = vmul.f32 %v2338, 1.442695
  %v2370 = vpow.pop %v2369
  %v2371 = vmul.f32 %v2339, 1.442695
  %v2372 = vpow.pop %v2371
  %v2373 = vmul.f32 %v2340, 1.442695
  %v2374 = vpow.pop %v2373
  %v2375 = vmul.f32 %v2341, 1.442695
  %v2376 = vpow.pop %v2375
  %v2377 = vmul.f32 %v2342, 1.442695
  %v2378 = vpow.pop %v2377
  %v2379 = vmul.f32 %v2343, 1.442695
  %v2380 = vpow.pop %v2379
  %v2381 = vmul.f32 %v2344, 1.442695
  %v2382 = vpow.pop %v2381
  %v2383 = vmul.f32 %v2345, 1.442695
  %v2384 = vpow.pop %v2383
  %v2385 = vmul.f32 %v2346, 1.442695
  %v2386 = vpow.pop %v2385
  %v2387 = vmul.f32 %v2347, 1.442695
  %v2388 = vpow.pop %v2387
  %v2389 = vmul.f32 %v2348, 1.442695
  %v2390 = vpow.pop %v2389
  %v2391 = vmul.f32 %v2349, 1.442695
  %v2392 = vpow.pop %v2391
  %v2393 = vmul.f32 %v2350, 1.442695
  %v2394 = vpow.pop %v2393
  %v2395 = vmul.f32 %v2351, 1.442695
  %v2396 = vpow.pop %v2395
  %v2397 = vmul.f32 %v2352, 1.442695
  %v2398 = vpow.pop %v2397
  %v2399 = vmul.f32 %v2353, 1.442695
  %v2400 = vpow.pop %v2399
  %v2401 = vmul.f32 %v2354, 1.442695
  %v2402 = vpow.pop %v2401
  %v2403 = vmul.f32 %v2355, 1.442695
  %v2404 = vpow.pop %v2403
  %v2405 = vmul.f32 %v2356, 1.442695
  %v2406 = vpow.pop %v2405
  %v2407 = vadd.f32 %v2358, 1.0
  %v2408 = vadd.f32 %v2360, 1.0
  %v2409 = vadd.f32 %v2362, 1.0
  %v2410 = vadd.f32 %v2364, 1.0
  %v2411 = vadd.f32 %v2366, 1.0
  %v2412 = vadd.f32 %v2368, 1.0
  %v2413 = vadd.f32 %v2370, 1.0
  %v2414 = vadd.f32 %v2372, 1.0
  %v2415 = vadd.f32 %v2374, 1.0
  %v2416 = vadd.f32 %v2376, 1.0
  %v2417 = vadd.f32 %v2378, 1.0
  %v2418 = vadd.f32 %v2380, 1.0
  %v2419 = vadd.f32 %v2382, 1.0
  %v2420 = vadd.f32 %v2384, 1.0
  %v2421 = vadd.f32 %v2386, 1.0
  %v2422 = vadd.f32 %v2388, 1.0
  %v2423 = vadd.f32 %v2390, 1.0
  %v2424 = vadd.f32 %v2392, 1.0
  %v2425 = vadd.f32 %v2394, 1.0
  %v2426 = vadd.f32 %v2396, 1.0
  %v2427 = vadd.f32 %v2398, 1.0
  %v2428 = vadd.f32 %v2400, 1.0
  %v2429 = vadd.f32 %v2402, 1.0
  %v2430 = vadd.f32 %v2404, 1.0
  %v2431 = vadd.f32 %v2406, 1.0
  %v2432 = vrcp.pop %v2407
  %v2433 = vmul.f32 1.0, %v2432
  %v2434 = vrcp.pop %v2408
  %v2435 = vmul.f32 1.0, %v2434
  %v2436 = vrcp.pop %v2409
  %v2437 = vmul.f32 1.0, %v2436
  %v2438 = vrcp.pop %v2410
  %v2439 = vmul.f32 1.0, %v2438
  %v2440 = vrcp.pop %v2411
  %v2441 = vmul.f32 1.0, %v2440
  %v2442 = vrcp.pop %v2412
  %v2443 = vmul.f32 1.0, %v2442
  %v2444 = vrcp.pop %v2413
  %v2445 = vmul.f32 1.0, %v2444
  %v2446 = vrcp.pop %v2414
  %v2447 = vmul.f32 1.0, %v2446
  %v2448 = vrcp.pop %v2415
  %v2449 = vmul.f32 1.0, %v2448
  %v2450 = vrcp.pop %v2416
  %v2451 = vmul.f32 1.0, %v2450
  %v2452 = vrcp.pop %v2417
  %v2453 = vmul.f32 1.0, %v2452
  %v2454 = vrcp.pop %v2418
  %v2455 = vmul.f32 1.0, %v2454
  %v2456 = vrcp.pop %v2419
  %v2457 = vmul.f32 1.0, %v2456
  %v2458 = vrcp.pop %v2420
  %v2459 = vmul.f32 1.0, %v2458
  %v2460 = vrcp.pop %v2421
  %v2461 = vmul.f32 1.0, %v2460
  %v2462 = vrcp.pop %v2422
  %v2463 = vmul.f32 1.0, %v2462
  %v2464 = vrcp.pop %v2423
  %v2465 = vmul.f32 1.0, %v2464
  %v2466 = vrcp.pop %v2424
  %v2467 = vmul.f32 1.0, %v2466
  %v2468 = vrcp.pop %v2425
  %v2469 = vmul.f32 1.0, %v2468
  %v2470 = vrcp.pop %v2426
  %v2471 = vmul.f32 1.0, %v2470
  %v2472 = vrcp.pop %v2427
  %v2473 = vmul.f32 1.0, %v2472
  %v2474 = vrcp.pop %v2428
  %v2475 = vmul.f32 1.0, %v2474
  %v2476 = vrcp.pop %v2429
  %v2477 = vmul.f32 1.0, %v2476
  %v2478 = vrcp.pop %v2430
  %v2479 = vmul.f32 1.0, %v2478
  %v2480 = vrcp.pop %v2431
  %v2481 = vmul.f32 1.0, %v2480
  %vm2482 = vcmask 23552
  %2483 = vst.msk [vmem:[%s3] sm:$0xff] %vm2482, %v2433
  %2484 = vst.msk [vmem:[%s3 + $0x8] sm:$0xff] %vm2482, %v2435
  %2485 = vst.msk [vmem:[%s3 + $0x10] sm:$0xff] %vm2482, %v2437
  %2486 = vst.msk [vmem:[%s3 + $0x18] sm:$0xff] %vm2482, %v2439
  %2487 = vst.msk [vmem:[%s3 + $0x20] sm:$0xff] %vm2482, %v2441
  %2488 = vst.msk [vmem:[%s3 + $0x28] sm:$0xff] %vm2482, %v2443
  %2489 = vst.msk [vmem:[%s3 + $0x30] sm:$0xff] %vm2482, %v2445
  %2490 = vst.msk [vmem:[%s3 + $0x38] sm:$0xff] %vm2482, %v2447
  %2491 = vst.msk [vmem:[%s3 + $0x40] sm:$0xff] %vm2482, %v2449
  %2492 = vst.msk [vmem:[%s3 + $0x48] sm:$0xff] %vm2482, %v2451
  %2493 = vst.msk [vmem:[%s3 + $0x50] sm:$0xff] %vm2482, %v2453
  %2494 = vst.msk [vmem:[%s3 + $0x58] sm:$0xff] %vm2482, %v2455
  %2495 = vst.msk [vmem:[%s3 + $0x60] sm:$0xff] %vm2482, %v2457
  %2496 = vst.msk [vmem:[%s3 + $0x68] sm:$0xff] %vm2482, %v2459
  %2497 = vst.msk [vmem:[%s3 + $0x70] sm:$0xff] %vm2482, %v2461
  %2498 = vst.msk [vmem:[%s3 + $0x78] sm:$0xff] %vm2482, %v2463
  %2499 = vst.msk [vmem:[%s3 + $0x80] sm:$0xff] %vm2482, %v2465
  %2500 = vst.msk [vmem:[%s3 + $0x88] sm:$0xff] %vm2482, %v2467
  %2501 = vst.msk [vmem:[%s3 + $0x90] sm:$0xff] %vm2482, %v2469
  %2502 = vst.msk [vmem:[%s3 + $0x98] sm:$0xff] %vm2482, %v2471
  %2503 = vst.msk [vmem:[%s3 + $0xa0] sm:$0xff] %vm2482, %v2473
  %2504 = vst.msk [vmem:[%s3 + $0xa8] sm:$0xff] %vm2482, %v2475
  %2505 = vst.msk [vmem:[%s3 + $0xb0] sm:$0xff] %vm2482, %v2477
  %2506 = vst.msk [vmem:[%s3 + $0xb8] sm:$0xff] %vm2482, %v2479
  %2507 = vst.msk [vmem:[%s3 + $0xc0] sm:$0xff] %vm2482, %v2481
  %2508 = vrot.lane.b32.xlu0 %v1537, 99
  %v2509 = vpop.permute.xlu0 %2508
  %2510 = vrot.lane.b32.xlu0 %v1542, 99
  %v2511 = vpop.permute.xlu0 %2510
  %2512 = vrot.lane.b32.xlu0 %v1547, 99
  %v2513 = vpop.permute.xlu0 %2512
  %2514 = vrot.lane.b32.xlu0 %v1552, 99
  %v2515 = vpop.permute.xlu0 %2514
  %2516 = vrot.lane.b32.xlu0 %v1557, 99
  %v2517 = vpop.permute.xlu0 %2516
  %2518 = vrot.lane.b32.xlu0 %v1562, 99
  %v2519 = vpop.permute.xlu0 %2518
  %2520 = vrot.lane.b32.xlu0 %v1567, 99
  %v2521 = vpop.permute.xlu0 %2520
  %2522 = vrot.lane.b32.xlu0 %v1572, 99
  %v2523 = vpop.permute.xlu0 %2522
  %2524 = vrot.lane.b32.xlu0 %v1577, 99
  %v2525 = vpop.permute.xlu0 %2524
  %2526 = vrot.lane.b32.xlu0 %v1582, 99
  %v2527 = vpop.permute.xlu0 %2526
  %2528 = vrot.lane.b32.xlu0 %v1587, 99
  %v2529 = vpop.permute.xlu0 %2528
  %2530 = vrot.lane.b32.xlu0 %v1592, 99
  %v2531 = vpop.permute.xlu0 %2530
  %2532 = vrot.lane.b32.xlu0 %v1597, 99
  %v2533 = vpop.permute.xlu0 %2532
  %2534 = vrot.lane.b32.xlu0 %v1602, 99
  %v2535 = vpop.permute.xlu0 %2534
  %2536 = vrot.lane.b32.xlu0 %v1607, 99
  %v2537 = vpop.permute.xlu0 %2536
  %2538 = vrot.lane.b32.xlu0 %v1612, 99
  %v2539 = vpop.permute.xlu0 %2538
  %2540 = vrot.lane.b32.xlu0 %v1617, 99
  %v2541 = vpop.permute.xlu0 %2540
  %2542 = vrot.lane.b32.xlu0 %v1622, 99
  %v2543 = vpop.permute.xlu0 %2542
  %2544 = vrot.lane.b32.xlu0 %v1627, 99
  %v2545 = vpop.permute.xlu0 %2544
  %2546 = vrot.lane.b32.xlu0 %v1632, 99
  %v2547 = vpop.permute.xlu0 %2546
  %2548 = vrot.lane.b32.xlu0 %v1637, 99
  %v2549 = vpop.permute.xlu0 %2548
  %2550 = vrot.lane.b32.xlu0 %v1642, 99
  %v2551 = vpop.permute.xlu0 %2550
  %2552 = vrot.lane.b32.xlu0 %v1647, 99
  %v2553 = vpop.permute.xlu0 %2552
  %2554 = vrot.lane.b32.xlu0 %v1652, 99
  %v2555 = vpop.permute.xlu0 %2554
  %2556 = vrot.lane.b32.xlu0 %v1657, 99
  %v2557 = vpop.permute.xlu0 %2556
  %vm2583 = vcmask 31768
  %2584 = vst.msk [vmem:[%s3] sm:$0xff] %vm2583, %v2509
  %2585 = vst.msk [vmem:[%s3 + $0x8] sm:$0xff] %vm2583, %v2511
  %2586 = vst.msk [vmem:[%s3 + $0x10] sm:$0xff] %vm2583, %v2513
  %2587 = vst.msk [vmem:[%s3 + $0x18] sm:$0xff] %vm2583, %v2515
  %2588 = vst.msk [vmem:[%s3 + $0x20] sm:$0xff] %vm2583, %v2517
  %2589 = vst.msk [vmem:[%s3 + $0x28] sm:$0xff] %vm2583, %v2519
  %2590 = vst.msk [vmem:[%s3 + $0x30] sm:$0xff] %vm2583, %v2521
  %2591 = vst.msk [vmem:[%s3 + $0x38] sm:$0xff] %vm2583, %v2523
  %2592 = vst.msk [vmem:[%s3 + $0x40] sm:$0xff] %vm2583, %v2525
  %2593 = vst.msk [vmem:[%s3 + $0x48] sm:$0xff] %vm2583, %v2527
  %2594 = vst.msk [vmem:[%s3 + $0x50] sm:$0xff] %vm2583, %v2529
  %2595 = vst.msk [vmem:[%s3 + $0x58] sm:$0xff] %vm2583, %v2531
  %2596 = vst.msk [vmem:[%s3 + $0x60] sm:$0xff] %vm2583, %v2533
  %2597 = vst.msk [vmem:[%s3 + $0x68] sm:$0xff] %vm2583, %v2535
  %2598 = vst.msk [vmem:[%s3 + $0x70] sm:$0xff] %vm2583, %v2537
  %2599 = vst.msk [vmem:[%s3 + $0x78] sm:$0xff] %vm2583, %v2539
  %2600 = vst.msk [vmem:[%s3 + $0x80] sm:$0xff] %vm2583, %v2541
  %2601 = vst.msk [vmem:[%s3 + $0x88] sm:$0xff] %vm2583, %v2543
  %2602 = vst.msk [vmem:[%s3 + $0x90] sm:$0xff] %vm2583, %v2545
  %2603 = vst.msk [vmem:[%s3 + $0x98] sm:$0xff] %vm2583, %v2547
  %2604 = vst.msk [vmem:[%s3 + $0xa0] sm:$0xff] %vm2583, %v2549
  %2605 = vst.msk [vmem:[%s3 + $0xa8] sm:$0xff] %vm2583, %v2551
  %2606 = vst.msk [vmem:[%s3 + $0xb0] sm:$0xff] %vm2583, %v2553
  %2607 = vst.msk [vmem:[%s3 + $0xb8] sm:$0xff] %vm2583, %v2555
  %2608 = vst.msk [vmem:[%s3 + $0xc0] sm:$0xff] %vm2583, %v2557
  // Predicated region
  $region14: #{tpu_custom_call.1} parent=0 // pred_check
    _
  $region15: #{tpu_custom_call.1} parent=0 // pred_check_branch
    %2610 = sbr.rel (0) target = $region17
  $region16: #{tpu_custom_call.1} parent=0 // pred_region
    _
  $region17: #{tpu_custom_call.1} parent=0 // pred_fallthru
    _
  // Predicated region
  $region18: #{tpu_custom_call.1} parent=0 // pred_check
    _
  $region19: #{tpu_custom_call.1} parent=0 // pred_check_branch
    %2612 = sbr.rel (0) target = $region21
  $region20: #{tpu_custom_call.1} parent=0 // pred_region
    _
  $region21: #{tpu_custom_call.1} parent=0 // pred_fallthru
    _

</llo_original>
